<compile_context>
chip_gen: v7x
topology: tpu7x:2x2x1
jax: 0.10.0
libtpu: 0.0.40
codegen_flags: <defaults>
</compile_context>

<pallas_src>
import functools

import jax
import jax.numpy as jnp
from jax.experimental import pallas as pl
from jax.experimental.pallas import tpu as pltpu

EPS = 1e-5


# ----------------------------------------------------------------------------
# Fused kernel: conv1(+bn1,relu)->pool1 -> conv2(+bn2,relu)->pool2 -> flatten
#               -> fc1(+bn3,relu) -> fc2        (whole batch, one invocation)
# ----------------------------------------------------------------------------
def _cnn_fused_kernel(x_ref, w1_ref, w2_ref, wf1_ref, wf2_ref, b_ref, o_ref,
                      *, B, L):
    f32, bf16 = jnp.float32, jnp.bfloat16
    L4 = L // 4
    BL4 = B * L4
    C1, C2 = 16, 32
    NC = o_ref.shape[1]

    # Packed biases (single DMA): row0=conv1(16), row1=conv2(32), row2=fc1(64),
    # row3=fc2(NC); kept f32 so the adds stay on the f32 VPU path.
    b1 = b_ref[0:1, 0:C1]
    b2 = b_ref[1:2, 0:C2]
    bf1 = b_ref[2:3, 0:64]
    bf2 = b_ref[3:4, 0:NC]

    # Interleaved layout: row r = b*L4 + l4 holds x[b, 4*l4 : 4*l4+4] in lanes.
    x4 = x_ref[...]                                        # (BL4, 4)
    c0, c1, c2, c3 = (x4[:, j:j + 1] for j in range(4))
    l4_idx = jax.lax.broadcasted_iota(jnp.int32, (BL4, 1), 0) % L4
    z11 = jnp.zeros((1, 1), f32)
    # Neighbouring samples across row boundaries (zero pad at sample edges).
    cm1 = jnp.where(l4_idx >= 1,
                    jnp.concatenate([z11, c3[:-1, :]], axis=0), 0.0)  # x[4l4-1]
    c4 = jnp.where(l4_idx <= L4 - 2,
                   jnp.concatenate([c0[1:, :], z11], axis=0), 0.0)    # x[4l4+4]

    # ---------- conv1 (1->16, k=3, pad=1) + bn1 + relu : pure VPU FMAs -------
    w1 = w1_ref[...]
    w10, w11, w12 = w1[0:1, :], w1[1:2, :], w1[2:3, :]
    h1_0 = jnp.maximum(cm1 * w10 + c0 * w11 + c1 * w12 + b1, 0.0)  # pos 4l4
    h1_1 = jnp.maximum(c0 * w10 + c1 * w11 + c2 * w12 + b1, 0.0)   # pos 4l4+1
    h1_2 = jnp.maximum(c1 * w10 + c2 * w11 + c3 * w12 + b1, 0.0)   # pos 4l4+2
    h1_3 = jnp.maximum(c2 * w10 + c3 * w11 + c4 * w12 + b1, 0.0)   # pos 4l4+3
    # dropout1: identity at inference

    # ---------- maxpool1 (k=2,s=2): in-lane pair max (no row movement) -------
    p1_e = jnp.maximum(h1_0, h1_1)     # pooled position 2*l4    (BL4, 16)
    p1_o = jnp.maximum(h1_2, h1_3)     # pooled position 2*l4+1  (BL4, 16)

    # ---------- conv2 (16->32, k=3, pad=1) + bn2 + relu : bf16 MXU dots ------
    z116 = jnp.zeros((1, C1), f32)
    p1o_prev = jnp.where(l4_idx >= 1,
                         jnp.concatenate([z116, p1_o[:-1, :]], axis=0), 0.0)
    p1e_next = jnp.where(l4_idx <= L4 - 2,
                         jnp.concatenate([p1_e[1:, :], z116], axis=0), 0.0)
    taps_e = jnp.concatenate([p1o_prev, p1_e, p1_o], axis=1).astype(bf16)  # q=2l4
    taps_o = jnp.concatenate([p1_e, p1_o, p1e_next], axis=1).astype(bf16)  # q=2l4+1
    w2 = w2_ref[...]
    h2_e = jnp.maximum(jnp.dot(taps_e, w2, preferred_element_type=f32) + b2, 0.0)
    h2_o = jnp.maximum(jnp.dot(taps_o, w2, preferred_element_type=f32) + b2, 0.0)
    # dropout2: identity at inference

    # ---------- maxpool2: in-lane pair max -----------------------------------
    p2 = jnp.maximum(h2_e, h2_o)       # (BL4, 32), row b*L4+l4 = pooled pos l4

    # ---------- flatten (B*L4, 32) -> (B, L4*32): static slices + lane concat
    # h_flat[b, l4*32 + c] = p2[b*L4 + l4, c]; the [l4, c] ordering is folded
    # into fc1's weight in the wrapper.  Only proven-safe ops (slice/concat).
    rows = [p2[r:r + 1, :] for r in range(BL4)]
    h_flat = jnp.concatenate(
        [jnp.concatenate(rows[b * L4:(b + 1) * L4], axis=1) for b in range(B)],
        axis=0).astype(bf16)                               # (B, L4*32)

    # ---------- fc1 + bn3 + relu -> fc2 --------------------------------------
    z = jnp.dot(h_flat, wf1_ref[...], preferred_element_type=f32) + bf1
    z = jnp.maximum(z, 0.0)            # dropout3: identity at inference
    o_ref[...] = jnp.dot(z.astype(bf16), wf2_ref[...],
                         preferred_element_type=f32) + bf2


# ----------------------------------------------------------------------------
# BN folding + bf16 weight casting (done ONCE, outside the jitted forward)
# ----------------------------------------------------------------------------
def fold_params(p):
    # conv1 + bn1 (stays f32 -> VPU FMAs)
    s1 = p["g1"] / jnp.sqrt(p["v1"] + EPS)
    w1_f = (p["w1"][:, 0, :] * s1[:, None]).T                           # (3, 16)
    b1_f = (p["cb1"] - p["m1"]) * s1 + p["be1"]                         # (16,)
    # conv2 + bn2  ->  rows ordered [tap k, in-channel]
    s2 = p["g2"] / jnp.sqrt(p["v2"] + EPS)
    w2_f = jnp.transpose(p["w2"] * s2[:, None, None], (2, 1, 0)).reshape(48, 32)
    b2_f = (p["cb2"] - p["m2"]) * s2 + p["be2"]                         # (32,)
    # fc1 + bn3  ->  feature rows permuted from torch order c*L4+l4 to l4*32+c
    s3 = p["g3"] / jnp.sqrt(p["v3"] + EPS)
    H, F = p["wfc1"].shape
    L4 = F // 32
    wf1_f = jnp.transpose((p["wfc1"] * s3[:, None]).reshape(H, 32, L4),
                          (2, 1, 0)).reshape(F, H)                      # (F, 64)
    bf1_f = (p["bfc1"] - p["m3"]) * s3 + p["be3"]                       # (64,)
    # fc2
    wf2_f = p["wfc2"].T                                                 # (64, C)
    bf2_f = p["bfc2"]                                                   # (C,)
    nc = wf2_f.shape[1]
    biases = jnp.zeros((4, 128), jnp.float32)
    biases = biases.at[0, :16].set(b1_f).at[1, :32].set(b2_f)
    biases = biases.at[2, :64].set(bf1_f).at[3, :nc].set(bf2_f)
    return dict(w1=w1_f.astype(jnp.float32),
                w2=w2_f.astype(jnp.bfloat16),
                wf1=wf1_f.astype(jnp.bfloat16),
                wf2=wf2_f.astype(jnp.bfloat16),
                biases=biases)


# ----------------------------------------------------------------------------
# Wrapper
# ----------------------------------------------------------------------------
def cnn_model_forward(x, fp):
    """x: (B, input_size) float32, fp: folded params. Returns (B, num_classes)."""
    B, L = x.shape
    assert L % 4 == 0, "input_size must be divisible by 4 (two maxpool(2) stages)"
    num_classes = fp["wf2"].shape[1]

    # Interleave 4 consecutive samples per row (free relayout in XLA).
    x4 = x.astype(jnp.float32).reshape(B * (L // 4), 4)

    kernel = functools.partial(_cnn_fused_kernel, B=B, L=L)
    vmem = pl.BlockSpec(memory_space=pltpu.MemorySpace.VMEM)
    return pl.pallas_call(
        kernel,
        in_specs=[vmem] * 6,
        out_specs=vmem,
        out_shape=jax.ShapeDtypeStruct((B, num_classes), jnp.float32),
    )(x4, fp["w1"], fp["w2"], fp["wf1"], fp["wf2"], fp["biases"])


# ----------------------------------------------------------------------------
# Deterministic parameter init + pure-JAX reference (eval-mode PyTorch semantics)
# ----------------------------------------------------------------------------
def init_params(key, input_size, num_classes):
    F = 32 * (input_size // 4)  # conv_output_size
    ks = jax.random.split(key, 20)
    u = lambda k, s, lo, hi: jax.random.uniform(k, s, jnp.float32, lo, hi)
    n = lambda k, s, sc: sc * jax.random.normal(k, s, jnp.float32)
    return dict(
        w1=n(ks[0], (16, 1, 3), 0.3), cb1=n(ks[1], (16,), 0.1),
        g1=u(ks[2], (16,), 0.8, 1.2), be1=n(ks[3], (16,), 0.1),
        m1=n(ks[4], (16,), 0.1), v1=u(ks[5], (16,), 0.5, 1.5),
        w2=n(ks[6], (32, 16, 3), 0.1), cb2=n(ks[7], (32,), 0.1),
        g2=u(ks[8], (32,), 0.8, 1.2), be2=n(ks[9], (32,), 0.1),
        m2=n(ks[10], (32,), 0.1), v2=u(ks[11], (32,), 0.5, 1.5),
        wfc1=n(ks[12], (64, F), 0.05), bfc1=n(ks[13], (64,), 0.1),
        g3=u(ks[14], (64,), 0.8, 1.2), be3=n(ks[15], (64,), 0.1),
        m3=n(ks[16], (64,), 0.1), v3=u(ks[17], (64,), 0.5, 1.5),
        wfc2=n(ks[18], (num_classes, 64), 0.1), bfc2=n(ks[19], (num_classes,), 0.1),
    )


def ref_forward(x, p):
    bn = lambda y, g, b, m, v: (y - m[None, :, None]) / jnp.sqrt(v[None, :, None] + EPS) \
        * g[None, :, None] + b[None, :, None]
    y = x[:, None, :]
    y = jax.lax.conv_general_dilated(y, p["w1"], (1,), [(1, 1)],
                                     dimension_numbers=("NCH", "OIH", "NCH"))
    y = jnp.maximum(bn(y + p["cb1"][None, :, None], p["g1"], p["be1"], p["m1"], p["v1"]), 0.0)
    B, C, L = y.shape
    y = y.reshape(B, C, L // 2, 2).max(-1)
    y = jax.lax.conv_general_dilated(y, p["w2"], (1,), [(1, 1)],
                                     dimension_numbers=("NCH", "OIH", "NCH"))
    y = jnp.maximum(bn(y + p["cb2"][None, :, None], p["g2"], p["be2"], p["m2"], p["v2"]), 0.0)
    B, C, L = y.shape
    y = y.reshape(B, C, L // 2, 2).max(-1)
    y = y.reshape(B, -1)
    z = y @ p["wfc1"].T + p["bfc1"]
    z = (z - p["m3"]) / jnp.sqrt(p["v3"] + EPS) * p["g3"] + p["be3"]
    z = jnp.maximum(z, 0.0)
    return z @ p["wfc2"].T + p["bfc2"]


if __name__ == "__main__":
    INPUT_SIZE = 64   # sequence length fed to Conv1d (after unsqueeze(1))
    NUM_CLASSES = 5
    BATCH = 4

    key = jax.random.PRNGKey(0)
    kx, kp = jax.random.split(key)
    x = jax.random.normal(kx, (BATCH, INPUT_SIZE), jnp.float32)
    params = init_params(kp, INPUT_SIZE, NUM_CLASSES)

    folded = fold_params(params)                 # BN folded once, off the hot path
    forward = jax.jit(cnn_model_forward)

    out = jax.block_until_ready(forward(x, folded))
    ref = jax.block_until_ready(ref_forward(x, params))

    max_err = float(jnp.max(jnp.abs(out - ref)))
    assert out.shape == (BATCH, NUM_CLASSES)
    assert max_err < 5e-2, f"mismatch vs reference: {max_err}"

    print("KERNEL_OK")
</pallas_src>

<mosaic_0001>
module attributes {stable_mosaic.version = 11 : i64} {
  func.func @_cnn_fused_kernel(%arg0: memref<64x4xf32, #tpu.memory_space<vmem>>, %arg1: memref<3x16xf32, #tpu.memory_space<vmem>>, %arg2: memref<48x32xbf16, #tpu.memory_space<vmem>>, %arg3: memref<512x64xbf16, #tpu.memory_space<vmem>>, %arg4: memref<64x5xbf16, #tpu.memory_space<vmem>>, %arg5: memref<4x128xf32, #tpu.memory_space<vmem>>, %arg6: memref<4x5xf32, #tpu.memory_space<vmem>>) attributes {dimension_semantics = [], scalar_prefetch = 0 : i64, scratch_operands = 0 : i64, tpu.core_type = #tpu.core_type<tc>} {
    %c0 = arith.constant 0 : index
    %c0_0 = arith.constant 0 : index
    %0 = vector.load %arg5[%c0, %c0_0] : memref<4x128xf32, #tpu.memory_space<vmem>>, vector<1x16xf32>
    %c1 = arith.constant 1 : index
    %c0_1 = arith.constant 0 : index
    %1 = vector.load %arg5[%c1, %c0_1] : memref<4x128xf32, #tpu.memory_space<vmem>>, vector<1x32xf32>
    %c2 = arith.constant 2 : index
    %c0_2 = arith.constant 0 : index
    %2 = vector.load %arg5[%c2, %c0_2] : memref<4x128xf32, #tpu.memory_space<vmem>>, vector<1x64xf32>
    %c3 = arith.constant 3 : index
    %c0_3 = arith.constant 0 : index
    %3 = vector.load %arg5[%c3, %c0_3] : memref<4x128xf32, #tpu.memory_space<vmem>>, vector<1x5xf32>
    %c0_4 = arith.constant 0 : index
    %c0_5 = arith.constant 0 : index
    %4 = vector.load %arg0[%c0_4, %c0_5] : memref<64x4xf32, #tpu.memory_space<vmem>>, vector<64x4xf32>
    %5 = vector.extract_strided_slice %4 {offsets = [0, 0], sizes = [64, 1], strides = [1, 1]} : vector<64x4xf32> to vector<64x1xf32>
    %6 = vector.extract_strided_slice %4 {offsets = [0, 1], sizes = [64, 1], strides = [1, 1]} : vector<64x4xf32> to vector<64x1xf32>
    %7 = vector.extract_strided_slice %4 {offsets = [0, 2], sizes = [64, 1], strides = [1, 1]} : vector<64x4xf32> to vector<64x1xf32>
    %8 = vector.extract_strided_slice %4 {offsets = [0, 3], sizes = [64, 1], strides = [1, 1]} : vector<64x4xf32> to vector<64x1xf32>
    %9 = tpu.iota {dimensions = array<i32: 0>} : vector<64x1xi32>
    %c16_i32 = arith.constant 16 : i32
    %c0_i32 = arith.constant 0 : i32
    %10 = arith.cmpi eq, %c16_i32, %c0_i32 : i32
    %c1_i32 = arith.constant 1 : i32
    %11 = arith.select %10, %c1_i32, %c16_i32 : i32
    %12 = vector.broadcast %11 : i32 to vector<64x1xi32>
    %13 = arith.remsi %9, %12 : vector<64x1xi32>
    %c0_i32_6 = arith.constant 0 : i32
    %14 = vector.broadcast %c0_i32_6 : i32 to vector<64x1xi32>
    %15 = arith.cmpi ne, %13, %14 : vector<64x1xi32>
    %c0_i32_7 = arith.constant 0 : i32
    %16 = vector.broadcast %c0_i32_7 : i32 to vector<64x1xi32>
    %17 = arith.cmpi slt, %13, %16 : vector<64x1xi32>
    %c0_i32_8 = arith.constant 0 : i32
    %18 = arith.cmpi slt, %11, %c0_i32_8 : i32
    %19 = vector.broadcast %18 : i1 to vector<64x1xi1>
    %20 = vector.broadcast %19 : vector<64x1xi1> to vector<64x1xi1>
    %21 = arith.xori %17, %20 : vector<64x1xi1>
    %22 = arith.andi %21, %15 : vector<64x1xi1>
    %23 = vector.broadcast %11 : i32 to vector<64x1xi32>
    %24 = arith.addi %13, %23 : vector<64x1xi32>
    %25 = arith.select %22, %24, %13 : vector<64x1xi1>, vector<64x1xi32>
    %cst = arith.constant 0.000000e+00 : f32
    %26 = vector.broadcast %cst : f32 to vector<1x1xf32>
    %c1_i32_9 = arith.constant 1 : i32
    %27 = vector.broadcast %c1_i32_9 : i32 to vector<64x1xi32>
    %28 = arith.cmpi sge, %25, %27 : vector<64x1xi32>
    %29 = vector.extract_strided_slice %8 {offsets = [0, 0], sizes = [63, 1], strides = [1, 1]} : vector<64x1xf32> to vector<63x1xf32>
    %30 = tpu.concatenate %26, %29 in 0 : vector<1x1xf32>, vector<63x1xf32> -> vector<64x1xf32>
    %cst_10 = arith.constant 0.000000e+00 : f32
    %31 = vector.broadcast %cst_10 : f32 to vector<64x1xf32>
    %32 = arith.select %28, %30, %31 : vector<64x1xi1>, vector<64x1xf32>
    %c14_i32 = arith.constant 14 : i32
    %33 = vector.broadcast %c14_i32 : i32 to vector<64x1xi32>
    %34 = arith.cmpi sle, %25, %33 : vector<64x1xi32>
    %35 = vector.extract_strided_slice %5 {offsets = [1, 0], sizes = [63, 1], strides = [1, 1]} : vector<64x1xf32> to vector<63x1xf32>
    %36 = tpu.concatenate %35, %26 in 0 : vector<63x1xf32>, vector<1x1xf32> -> vector<64x1xf32>
    %cst_11 = arith.constant 0.000000e+00 : f32
    %37 = vector.broadcast %cst_11 : f32 to vector<64x1xf32>
    %38 = arith.select %34, %36, %37 : vector<64x1xi1>, vector<64x1xf32>
    %c0_12 = arith.constant 0 : index
    %c0_13 = arith.constant 0 : index
    %39 = vector.load %arg1[%c0_12, %c0_13] : memref<3x16xf32, #tpu.memory_space<vmem>>, vector<3x16xf32>
    %40 = vector.extract_strided_slice %39 {offsets = [0, 0], sizes = [1, 16], strides = [1, 1]} : vector<3x16xf32> to vector<1x16xf32>
    %41 = vector.extract_strided_slice %39 {offsets = [1, 0], sizes = [1, 16], strides = [1, 1]} : vector<3x16xf32> to vector<1x16xf32>
    %42 = vector.extract_strided_slice %39 {offsets = [2, 0], sizes = [1, 16], strides = [1, 1]} : vector<3x16xf32> to vector<1x16xf32>
    %43 = vector.broadcast %32 : vector<64x1xf32> to vector<64x16xf32>
    %44 = vector.broadcast %40 : vector<1x16xf32> to vector<64x16xf32>
    %45 = arith.mulf %43, %44 : vector<64x16xf32>
    %46 = vector.broadcast %5 : vector<64x1xf32> to vector<64x16xf32>
    %47 = vector.broadcast %41 : vector<1x16xf32> to vector<64x16xf32>
    %48 = arith.mulf %46, %47 : vector<64x16xf32>
    %49 = arith.addf %45, %48 : vector<64x16xf32>
    %50 = vector.broadcast %6 : vector<64x1xf32> to vector<64x16xf32>
    %51 = vector.broadcast %42 : vector<1x16xf32> to vector<64x16xf32>
    %52 = arith.mulf %50, %51 : vector<64x16xf32>
    %53 = arith.addf %49, %52 : vector<64x16xf32>
    %54 = vector.broadcast %0 : vector<1x16xf32> to vector<64x16xf32>
    %55 = arith.addf %53, %54 : vector<64x16xf32>
    %cst_14 = arith.constant 0.000000e+00 : f32
    %56 = vector.broadcast %cst_14 : f32 to vector<64x16xf32>
    %57 = arith.maximumf %55, %56 : vector<64x16xf32>
    %58 = vector.broadcast %5 : vector<64x1xf32> to vector<64x16xf32>
    %59 = vector.broadcast %40 : vector<1x16xf32> to vector<64x16xf32>
    %60 = arith.mulf %58, %59 : vector<64x16xf32>
    %61 = vector.broadcast %6 : vector<64x1xf32> to vector<64x16xf32>
    %62 = vector.broadcast %41 : vector<1x16xf32> to vector<64x16xf32>
    %63 = arith.mulf %61, %62 : vector<64x16xf32>
    %64 = arith.addf %60, %63 : vector<64x16xf32>
    %65 = vector.broadcast %7 : vector<64x1xf32> to vector<64x16xf32>
    %66 = vector.broadcast %42 : vector<1x16xf32> to vector<64x16xf32>
    %67 = arith.mulf %65, %66 : vector<64x16xf32>
    %68 = arith.addf %64, %67 : vector<64x16xf32>
    %69 = vector.broadcast %0 : vector<1x16xf32> to vector<64x16xf32>
    %70 = arith.addf %68, %69 : vector<64x16xf32>
    %cst_15 = arith.constant 0.000000e+00 : f32
    %71 = vector.broadcast %cst_15 : f32 to vector<64x16xf32>
    %72 = arith.maximumf %70, %71 : vector<64x16xf32>
    %73 = vector.broadcast %6 : vector<64x1xf32> to vector<64x16xf32>
    %74 = vector.broadcast %40 : vector<1x16xf32> to vector<64x16xf32>
    %75 = arith.mulf %73, %74 : vector<64x16xf32>
    %76 = vector.broadcast %7 : vector<64x1xf32> to vector<64x16xf32>
    %77 = vector.broadcast %41 : vector<1x16xf32> to vector<64x16xf32>
    %78 = arith.mulf %76, %77 : vector<64x16xf32>
    %79 = arith.addf %75, %78 : vector<64x16xf32>
    %80 = vector.broadcast %8 : vector<64x1xf32> to vector<64x16xf32>
    %81 = vector.broadcast %42 : vector<1x16xf32> to vector<64x16xf32>
    %82 = arith.mulf %80, %81 : vector<64x16xf32>
    %83 = arith.addf %79, %82 : vector<64x16xf32>
    %84 = vector.broadcast %0 : vector<1x16xf32> to vector<64x16xf32>
    %85 = arith.addf %83, %84 : vector<64x16xf32>
    %cst_16 = arith.constant 0.000000e+00 : f32
    %86 = vector.broadcast %cst_16 : f32 to vector<64x16xf32>
    %87 = arith.maximumf %85, %86 : vector<64x16xf32>
    %88 = vector.broadcast %7 : vector<64x1xf32> to vector<64x16xf32>
    %89 = vector.broadcast %40 : vector<1x16xf32> to vector<64x16xf32>
    %90 = arith.mulf %88, %89 : vector<64x16xf32>
    %91 = vector.broadcast %8 : vector<64x1xf32> to vector<64x16xf32>
    %92 = vector.broadcast %41 : vector<1x16xf32> to vector<64x16xf32>
    %93 = arith.mulf %91, %92 : vector<64x16xf32>
    %94 = arith.addf %90, %93 : vector<64x16xf32>
    %95 = vector.broadcast %38 : vector<64x1xf32> to vector<64x16xf32>
    %96 = vector.broadcast %42 : vector<1x16xf32> to vector<64x16xf32>
    %97 = arith.mulf %95, %96 : vector<64x16xf32>
    %98 = arith.addf %94, %97 : vector<64x16xf32>
    %99 = vector.broadcast %0 : vector<1x16xf32> to vector<64x16xf32>
    %100 = arith.addf %98, %99 : vector<64x16xf32>
    %cst_17 = arith.constant 0.000000e+00 : f32
    %101 = vector.broadcast %cst_17 : f32 to vector<64x16xf32>
    %102 = arith.maximumf %100, %101 : vector<64x16xf32>
    %103 = arith.maximumf %57, %72 : vector<64x16xf32>
    %104 = arith.maximumf %87, %102 : vector<64x16xf32>
    %cst_18 = arith.constant 0.000000e+00 : f32
    %105 = vector.broadcast %cst_18 : f32 to vector<1x16xf32>
    %c1_i32_19 = arith.constant 1 : i32
    %106 = vector.broadcast %c1_i32_19 : i32 to vector<64x1xi32>
    %107 = arith.cmpi sge, %25, %106 : vector<64x1xi32>
    %108 = vector.extract_strided_slice %104 {offsets = [0, 0], sizes = [63, 16], strides = [1, 1]} : vector<64x16xf32> to vector<63x16xf32>
    %109 = tpu.concatenate %105, %108 in 0 : vector<1x16xf32>, vector<63x16xf32> -> vector<64x16xf32>
    %cst_20 = arith.constant 0.000000e+00 : f32
    %110 = vector.shape_cast %107 : vector<64x1xi1> to vector<64x1xi1>
    %111 = vector.broadcast %110 : vector<64x1xi1> to vector<64x16xi1>
    %112 = vector.broadcast %cst_20 : f32 to vector<64x16xf32>
    %113 = arith.select %111, %109, %112 : vector<64x16xi1>, vector<64x16xf32>
    %c14_i32_21 = arith.constant 14 : i32
    %114 = vector.broadcast %c14_i32_21 : i32 to vector<64x1xi32>
    %115 = arith.cmpi sle, %25, %114 : vector<64x1xi32>
    %116 = vector.extract_strided_slice %103 {offsets = [1, 0], sizes = [63, 16], strides = [1, 1]} : vector<64x16xf32> to vector<63x16xf32>
    %117 = tpu.concatenate %116, %105 in 0 : vector<63x16xf32>, vector<1x16xf32> -> vector<64x16xf32>
    %cst_22 = arith.constant 0.000000e+00 : f32
    %118 = vector.shape_cast %115 : vector<64x1xi1> to vector<64x1xi1>
    %119 = vector.broadcast %118 : vector<64x1xi1> to vector<64x16xi1>
    %120 = vector.broadcast %cst_22 : f32 to vector<64x16xf32>
    %121 = arith.select %119, %117, %120 : vector<64x16xi1>, vector<64x16xf32>
    %122 = tpu.concatenate %113, %103, %104 in 1 : vector<64x16xf32>, vector<64x16xf32>, vector<64x16xf32> -> vector<64x48xf32>
    %123 = arith.truncf %122 : vector<64x48xf32> to vector<64x48xbf16>
    %124 = tpu.concatenate %103, %104, %121 in 1 : vector<64x16xf32>, vector<64x16xf32>, vector<64x16xf32> -> vector<64x48xf32>
    %125 = arith.truncf %124 : vector<64x48xf32> to vector<64x48xbf16>
    %c0_23 = arith.constant 0 : index
    %c0_24 = arith.constant 0 : index
    %126 = vector.load %arg2[%c0_23, %c0_24] : memref<48x32xbf16, #tpu.memory_space<vmem>>, vector<48x32xbf16>
    %cst_25 = arith.constant dense<0.000000e+00> : vector<64x32xf32>
    %127 = tpu.matmul %123, %126, %cst_25 {dimension_numbers = #tpu.dot_dimension_numbers<[1], [0], [0], [1], [0, 0, 1, 1], [], []>} : vector<64x48xbf16>, vector<48x32xbf16>, vector<64x32xf32> -> vector<64x32xf32>
    %128 = vector.broadcast %1 : vector<1x32xf32> to vector<64x32xf32>
    %129 = arith.addf %127, %128 : vector<64x32xf32>
    %cst_26 = arith.constant 0.000000e+00 : f32
    %130 = vector.broadcast %cst_26 : f32 to vector<64x32xf32>
    %131 = arith.maximumf %129, %130 : vector<64x32xf32>
    %cst_27 = arith.constant dense<0.000000e+00> : vector<64x32xf32>
    %132 = tpu.matmul %125, %126, %cst_27 {dimension_numbers = #tpu.dot_dimension_numbers<[1], [0], [0], [1], [0, 0, 1, 1], [], []>} : vector<64x48xbf16>, vector<48x32xbf16>, vector<64x32xf32> -> vector<64x32xf32>
    %133 = vector.broadcast %1 : vector<1x32xf32> to vector<64x32xf32>
    %134 = arith.addf %132, %133 : vector<64x32xf32>
    %cst_28 = arith.constant 0.000000e+00 : f32
    %135 = vector.broadcast %cst_28 : f32 to vector<64x32xf32>
    %136 = arith.maximumf %134, %135 : vector<64x32xf32>
    %137 = arith.maximumf %131, %136 : vector<64x32xf32>
    %138 = vector.extract_strided_slice %137 {offsets = [0, 0], sizes = [1, 32], strides = [1, 1]} : vector<64x32xf32> to vector<1x32xf32>
    %139 = vector.extract_strided_slice %137 {offsets = [1, 0], sizes = [1, 32], strides = [1, 1]} : vector<64x32xf32> to vector<1x32xf32>
    %140 = vector.extract_strided_slice %137 {offsets = [2, 0], sizes = [1, 32], strides = [1, 1]} : vector<64x32xf32> to vector<1x32xf32>
    %141 = vector.extract_strided_slice %137 {offsets = [3, 0], sizes = [1, 32], strides = [1, 1]} : vector<64x32xf32> to vector<1x32xf32>
    %142 = vector.extract_strided_slice %137 {offsets = [4, 0], sizes = [1, 32], strides = [1, 1]} : vector<64x32xf32> to vector<1x32xf32>
    %143 = vector.extract_strided_slice %137 {offsets = [5, 0], sizes = [1, 32], strides = [1, 1]} : vector<64x32xf32> to vector<1x32xf32>
    %144 = vector.extract_strided_slice %137 {offsets = [6, 0], sizes = [1, 32], strides = [1, 1]} : vector<64x32xf32> to vector<1x32xf32>
    %145 = vector.extract_strided_slice %137 {offsets = [7, 0], sizes = [1, 32], strides = [1, 1]} : vector<64x32xf32> to vector<1x32xf32>
    %146 = vector.extract_strided_slice %137 {offsets = [8, 0], sizes = [1, 32], strides = [1, 1]} : vector<64x32xf32> to vector<1x32xf32>
    %147 = vector.extract_strided_slice %137 {offsets = [9, 0], sizes = [1, 32], strides = [1, 1]} : vector<64x32xf32> to vector<1x32xf32>
    %148 = vector.extract_strided_slice %137 {offsets = [10, 0], sizes = [1, 32], strides = [1, 1]} : vector<64x32xf32> to vector<1x32xf32>
    %149 = vector.extract_strided_slice %137 {offsets = [11, 0], sizes = [1, 32], strides = [1, 1]} : vector<64x32xf32> to vector<1x32xf32>
    %150 = vector.extract_strided_slice %137 {offsets = [12, 0], sizes = [1, 32], strides = [1, 1]} : vector<64x32xf32> to vector<1x32xf32>
    %151 = vector.extract_strided_slice %137 {offsets = [13, 0], sizes = [1, 32], strides = [1, 1]} : vector<64x32xf32> to vector<1x32xf32>
    %152 = vector.extract_strided_slice %137 {offsets = [14, 0], sizes = [1, 32], strides = [1, 1]} : vector<64x32xf32> to vector<1x32xf32>
    %153 = vector.extract_strided_slice %137 {offsets = [15, 0], sizes = [1, 32], strides = [1, 1]} : vector<64x32xf32> to vector<1x32xf32>
    %154 = vector.extract_strided_slice %137 {offsets = [16, 0], sizes = [1, 32], strides = [1, 1]} : vector<64x32xf32> to vector<1x32xf32>
    %155 = vector.extract_strided_slice %137 {offsets = [17, 0], sizes = [1, 32], strides = [1, 1]} : vector<64x32xf32> to vector<1x32xf32>
    %156 = vector.extract_strided_slice %137 {offsets = [18, 0], sizes = [1, 32], strides = [1, 1]} : vector<64x32xf32> to vector<1x32xf32>
    %157 = vector.extract_strided_slice %137 {offsets = [19, 0], sizes = [1, 32], strides = [1, 1]} : vector<64x32xf32> to vector<1x32xf32>
    %158 = vector.extract_strided_slice %137 {offsets = [20, 0], sizes = [1, 32], strides = [1, 1]} : vector<64x32xf32> to vector<1x32xf32>
    %159 = vector.extract_strided_slice %137 {offsets = [21, 0], sizes = [1, 32], strides = [1, 1]} : vector<64x32xf32> to vector<1x32xf32>
    %160 = vector.extract_strided_slice %137 {offsets = [22, 0], sizes = [1, 32], strides = [1, 1]} : vector<64x32xf32> to vector<1x32xf32>
    %161 = vector.extract_strided_slice %137 {offsets = [23, 0], sizes = [1, 32], strides = [1, 1]} : vector<64x32xf32> to vector<1x32xf32>
    %162 = vector.extract_strided_slice %137 {offsets = [24, 0], sizes = [1, 32], strides = [1, 1]} : vector<64x32xf32> to vector<1x32xf32>
    %163 = vector.extract_strided_slice %137 {offsets = [25, 0], sizes = [1, 32], strides = [1, 1]} : vector<64x32xf32> to vector<1x32xf32>
    %164 = vector.extract_strided_slice %137 {offsets = [26, 0], sizes = [1, 32], strides = [1, 1]} : vector<64x32xf32> to vector<1x32xf32>
    %165 = vector.extract_strided_slice %137 {offsets = [27, 0], sizes = [1, 32], strides = [1, 1]} : vector<64x32xf32> to vector<1x32xf32>
    %166 = vector.extract_strided_slice %137 {offsets = [28, 0], sizes = [1, 32], strides = [1, 1]} : vector<64x32xf32> to vector<1x32xf32>
    %167 = vector.extract_strided_slice %137 {offsets = [29, 0], sizes = [1, 32], strides = [1, 1]} : vector<64x32xf32> to vector<1x32xf32>
    %168 = vector.extract_strided_slice %137 {offsets = [30, 0], sizes = [1, 32], strides = [1, 1]} : vector<64x32xf32> to vector<1x32xf32>
    %169 = vector.extract_strided_slice %137 {offsets = [31, 0], sizes = [1, 32], strides = [1, 1]} : vector<64x32xf32> to vector<1x32xf32>
    %170 = vector.extract_strided_slice %137 {offsets = [32, 0], sizes = [1, 32], strides = [1, 1]} : vector<64x32xf32> to vector<1x32xf32>
    %171 = vector.extract_strided_slice %137 {offsets = [33, 0], sizes = [1, 32], strides = [1, 1]} : vector<64x32xf32> to vector<1x32xf32>
    %172 = vector.extract_strided_slice %137 {offsets = [34, 0], sizes = [1, 32], strides = [1, 1]} : vector<64x32xf32> to vector<1x32xf32>
    %173 = vector.extract_strided_slice %137 {offsets = [35, 0], sizes = [1, 32], strides = [1, 1]} : vector<64x32xf32> to vector<1x32xf32>
    %174 = vector.extract_strided_slice %137 {offsets = [36, 0], sizes = [1, 32], strides = [1, 1]} : vector<64x32xf32> to vector<1x32xf32>
    %175 = vector.extract_strided_slice %137 {offsets = [37, 0], sizes = [1, 32], strides = [1, 1]} : vector<64x32xf32> to vector<1x32xf32>
    %176 = vector.extract_strided_slice %137 {offsets = [38, 0], sizes = [1, 32], strides = [1, 1]} : vector<64x32xf32> to vector<1x32xf32>
    %177 = vector.extract_strided_slice %137 {offsets = [39, 0], sizes = [1, 32], strides = [1, 1]} : vector<64x32xf32> to vector<1x32xf32>
    %178 = vector.extract_strided_slice %137 {offsets = [40, 0], sizes = [1, 32], strides = [1, 1]} : vector<64x32xf32> to vector<1x32xf32>
    %179 = vector.extract_strided_slice %137 {offsets = [41, 0], sizes = [1, 32], strides = [1, 1]} : vector<64x32xf32> to vector<1x32xf32>
    %180 = vector.extract_strided_slice %137 {offsets = [42, 0], sizes = [1, 32], strides = [1, 1]} : vector<64x32xf32> to vector<1x32xf32>
    %181 = vector.extract_strided_slice %137 {offsets = [43, 0], sizes = [1, 32], strides = [1, 1]} : vector<64x32xf32> to vector<1x32xf32>
    %182 = vector.extract_strided_slice %137 {offsets = [44, 0], sizes = [1, 32], strides = [1, 1]} : vector<64x32xf32> to vector<1x32xf32>
    %183 = vector.extract_strided_slice %137 {offsets = [45, 0], sizes = [1, 32], strides = [1, 1]} : vector<64x32xf32> to vector<1x32xf32>
    %184 = vector.extract_strided_slice %137 {offsets = [46, 0], sizes = [1, 32], strides = [1, 1]} : vector<64x32xf32> to vector<1x32xf32>
    %185 = vector.extract_strided_slice %137 {offsets = [47, 0], sizes = [1, 32], strides = [1, 1]} : vector<64x32xf32> to vector<1x32xf32>
    %186 = vector.extract_strided_slice %137 {offsets = [48, 0], sizes = [1, 32], strides = [1, 1]} : vector<64x32xf32> to vector<1x32xf32>
    %187 = vector.extract_strided_slice %137 {offsets = [49, 0], sizes = [1, 32], strides = [1, 1]} : vector<64x32xf32> to vector<1x32xf32>
    %188 = vector.extract_strided_slice %137 {offsets = [50, 0], sizes = [1, 32], strides = [1, 1]} : vector<64x32xf32> to vector<1x32xf32>
    %189 = vector.extract_strided_slice %137 {offsets = [51, 0], sizes = [1, 32], strides = [1, 1]} : vector<64x32xf32> to vector<1x32xf32>
    %190 = vector.extract_strided_slice %137 {offsets = [52, 0], sizes = [1, 32], strides = [1, 1]} : vector<64x32xf32> to vector<1x32xf32>
    %191 = vector.extract_strided_slice %137 {offsets = [53, 0], sizes = [1, 32], strides = [1, 1]} : vector<64x32xf32> to vector<1x32xf32>
    %192 = vector.extract_strided_slice %137 {offsets = [54, 0], sizes = [1, 32], strides = [1, 1]} : vector<64x32xf32> to vector<1x32xf32>
    %193 = vector.extract_strided_slice %137 {offsets = [55, 0], sizes = [1, 32], strides = [1, 1]} : vector<64x32xf32> to vector<1x32xf32>
    %194 = vector.extract_strided_slice %137 {offsets = [56, 0], sizes = [1, 32], strides = [1, 1]} : vector<64x32xf32> to vector<1x32xf32>
    %195 = vector.extract_strided_slice %137 {offsets = [57, 0], sizes = [1, 32], strides = [1, 1]} : vector<64x32xf32> to vector<1x32xf32>
    %196 = vector.extract_strided_slice %137 {offsets = [58, 0], sizes = [1, 32], strides = [1, 1]} : vector<64x32xf32> to vector<1x32xf32>
    %197 = vector.extract_strided_slice %137 {offsets = [59, 0], sizes = [1, 32], strides = [1, 1]} : vector<64x32xf32> to vector<1x32xf32>
    %198 = vector.extract_strided_slice %137 {offsets = [60, 0], sizes = [1, 32], strides = [1, 1]} : vector<64x32xf32> to vector<1x32xf32>
    %199 = vector.extract_strided_slice %137 {offsets = [61, 0], sizes = [1, 32], strides = [1, 1]} : vector<64x32xf32> to vector<1x32xf32>
    %200 = vector.extract_strided_slice %137 {offsets = [62, 0], sizes = [1, 32], strides = [1, 1]} : vector<64x32xf32> to vector<1x32xf32>
    %201 = vector.extract_strided_slice %137 {offsets = [63, 0], sizes = [1, 32], strides = [1, 1]} : vector<64x32xf32> to vector<1x32xf32>
    %202 = tpu.concatenate %138, %139, %140, %141, %142, %143, %144, %145, %146, %147, %148, %149, %150, %151, %152, %153 in 1 : vector<1x32xf32>, vector<1x32xf32>, vector<1x32xf32>, vector<1x32xf32>, vector<1x32xf32>, vector<1x32xf32>, vector<1x32xf32>, vector<1x32xf32>, vector<1x32xf32>, vector<1x32xf32>, vector<1x32xf32>, vector<1x32xf32>, vector<1x32xf32>, vector<1x32xf32>, vector<1x32xf32>, vector<1x32xf32> -> vector<1x512xf32>
    %203 = tpu.concatenate %154, %155, %156, %157, %158, %159, %160, %161, %162, %163, %164, %165, %166, %167, %168, %169 in 1 : vector<1x32xf32>, vector<1x32xf32>, vector<1x32xf32>, vector<1x32xf32>, vector<1x32xf32>, vector<1x32xf32>, vector<1x32xf32>, vector<1x32xf32>, vector<1x32xf32>, vector<1x32xf32>, vector<1x32xf32>, vector<1x32xf32>, vector<1x32xf32>, vector<1x32xf32>, vector<1x32xf32>, vector<1x32xf32> -> vector<1x512xf32>
    %204 = tpu.concatenate %170, %171, %172, %173, %174, %175, %176, %177, %178, %179, %180, %181, %182, %183, %184, %185 in 1 : vector<1x32xf32>, vector<1x32xf32>, vector<1x32xf32>, vector<1x32xf32>, vector<1x32xf32>, vector<1x32xf32>, vector<1x32xf32>, vector<1x32xf32>, vector<1x32xf32>, vector<1x32xf32>, vector<1x32xf32>, vector<1x32xf32>, vector<1x32xf32>, vector<1x32xf32>, vector<1x32xf32>, vector<1x32xf32> -> vector<1x512xf32>
    %205 = tpu.concatenate %186, %187, %188, %189, %190, %191, %192, %193, %194, %195, %196, %197, %198, %199, %200, %201 in 1 : vector<1x32xf32>, vector<1x32xf32>, vector<1x32xf32>, vector<1x32xf32>, vector<1x32xf32>, vector<1x32xf32>, vector<1x32xf32>, vector<1x32xf32>, vector<1x32xf32>, vector<1x32xf32>, vector<1x32xf32>, vector<1x32xf32>, vector<1x32xf32>, vector<1x32xf32>, vector<1x32xf32>, vector<1x32xf32> -> vector<1x512xf32>
    %206 = tpu.concatenate %202, %203, %204, %205 in 0 : vector<1x512xf32>, vector<1x512xf32>, vector<1x512xf32>, vector<1x512xf32> -> vector<4x512xf32>
    %207 = arith.truncf %206 : vector<4x512xf32> to vector<4x512xbf16>
    %c0_29 = arith.constant 0 : index
    %c0_30 = arith.constant 0 : index
    %208 = vector.load %arg3[%c0_29, %c0_30] : memref<512x64xbf16, #tpu.memory_space<vmem>>, vector<512x64xbf16>
    %cst_31 = arith.constant dense<0.000000e+00> : vector<4x64xf32>
    %209 = tpu.matmul %207, %208, %cst_31 {dimension_numbers = #tpu.dot_dimension_numbers<[1], [0], [0], [1], [0, 0, 1, 1], [], []>} : vector<4x512xbf16>, vector<512x64xbf16>, vector<4x64xf32> -> vector<4x64xf32>
    %210 = vector.broadcast %2 : vector<1x64xf32> to vector<4x64xf32>
    %211 = arith.addf %209, %210 : vector<4x64xf32>
    %cst_32 = arith.constant 0.000000e+00 : f32
    %212 = vector.broadcast %cst_32 : f32 to vector<4x64xf32>
    %213 = arith.maximumf %211, %212 : vector<4x64xf32>
    %214 = arith.truncf %213 : vector<4x64xf32> to vector<4x64xbf16>
    %c0_33 = arith.constant 0 : index
    %c0_34 = arith.constant 0 : index
    %215 = vector.load %arg4[%c0_33, %c0_34] : memref<64x5xbf16, #tpu.memory_space<vmem>>, vector<64x5xbf16>
    %cst_35 = arith.constant dense<0.000000e+00> : vector<4x5xf32>
    %216 = tpu.matmul %214, %215, %cst_35 {dimension_numbers = #tpu.dot_dimension_numbers<[1], [0], [0], [1], [0, 0, 1, 1], [], []>} : vector<4x64xbf16>, vector<64x5xbf16>, vector<4x5xf32> -> vector<4x5xf32>
    %217 = vector.broadcast %3 : vector<1x5xf32> to vector<4x5xf32>
    %218 = arith.addf %216, %217 : vector<4x5xf32>
    %c0_36 = arith.constant 0 : index
    %c0_37 = arith.constant 0 : index
    %219 = vector.load %arg6[%c0_36, %c0_37] : memref<4x5xf32, #tpu.memory_space<vmem>>, vector<4x5xf32>
    tpu.vector_store %arg6[%c0_36, %c0_37], %218 {strides = array<i32>} : memref<4x5xf32, #tpu.memory_space<vmem>>, vector<4x5xf32>,
    return
  }
}

</mosaic_0001>

<llo_original>
// kernel: cnn_model_forward.1
$region0: #{cnn_model_forward.1}
  #allocation0 [shape = 'u32[]', space=smem, size = 0x4, offset = 0x4, fixed_abs, tag = 'smem constant byte address 0x4 - core index']
  #allocation1 [shape = 'u32[144,128]{1,0:T(1,128)}', space=vmem, size = 0x12000, scoped, tag = 'internal scratch']
  %s0 = inlined_call_operand.vmem [shape: f32[64,4], index: 0, kind: input, shape index: {}]
  %s1 = inlined_call_operand.vmem [shape: f32[3,16], index: 1, kind: input, shape index: {}]
  %s2 = inlined_call_operand.vmem [shape: bf16[48,32], index: 2, kind: input, shape index: {}]
  %s3 = inlined_call_operand.vmem [shape: bf16[512,64], index: 3, kind: input, shape index: {}]
  %s4 = inlined_call_operand.vmem [shape: bf16[64,5], index: 4, kind: input, shape index: {}]
  %s5 = inlined_call_operand.vmem [shape: f32[4,128], index: 5, kind: input, shape index: {}]
  %s6 = inlined_call_operand.hbm [shape: f32[4,5], index: 6, kind: output, shape index: {}]
  %s7 = sld [smem:[#allocation0]]
  $region34: #{cnn_model_forward.1} parent=0
    _
  %s9 = ssub.s32 1, %s7
  %s10 = scalar_select 0, %s9, %s7
  $region1: #{cnn_model_forward.1} parent=0
    #allocation2 [shape = 'u8[2048]{0}', space=vmem, size = 0x800, scoped, tag = 'output window, operand 0, single buffered']
    #allocation3 [shape = 's32[1]{0}', space=sflag, size = 0x4, scoped, tag = 'scoped memory for cnn_model_forward.1']
    %11 = vsyncpa [#allocation3], 0
    // Predicated region
    $region2: #{cnn_model_forward.1} parent=1 // pred_check
      _
    $region3: #{cnn_model_forward.1} parent=1 // pred_check_branch
      %13 = sbr.rel (0) target = $region5
    $region4: #{cnn_model_forward.1} parent=1 // pred_region
      _
    $region5: #{cnn_model_forward.1} parent=1 // pred_fallthru
      _
    // Predicated region
    $region6: #{cnn_model_forward.1} parent=1 // pred_check
      _
    $region7: #{cnn_model_forward.1} parent=1 // pred_check_branch
      %15 = sbr.rel (0) target = $region9
    $region8: #{cnn_model_forward.1} parent=1 // pred_region
      _
    $region9: #{cnn_model_forward.1} parent=1 // pred_fallthru
      _
    // Predicated region
    $region10: #{cnn_model_forward.1} parent=1 // pred_check
      _
    $region11: #{cnn_model_forward.1} parent=1 // pred_check_branch
      %17 = sbr.rel (0) target = $region13
    $region12: #{cnn_model_forward.1} parent=1 // pred_region
      _
    $region13: #{cnn_model_forward.1} parent=1 // pred_fallthru
      _
    // Predicated region
    $region14: #{cnn_model_forward.1} parent=1 // pred_check
      _
    $region15: #{cnn_model_forward.1} parent=1 // pred_check_branch
      %19 = sbr.rel (0) target = $region17
    $region16: #{cnn_model_forward.1} parent=1 // pred_region
      _
    $region17: #{cnn_model_forward.1} parent=1 // pred_fallthru
      _
    // Predicated region
    $region18: #{cnn_model_forward.1} parent=1 // pred_check
      _
    $region19: #{cnn_model_forward.1} parent=1 // pred_check_branch
      %21 = sbr.rel (0) target = $region21
    $region20: #{cnn_model_forward.1} parent=1 // pred_region
      _
    $region21: #{cnn_model_forward.1} parent=1 // pred_fallthru
      _
    // Predicated region
    $region22: #{cnn_model_forward.1} parent=1 // pred_check
      _
    $region23: #{cnn_model_forward.1} parent=1 // pred_check_branch
      %23 = sbr.rel (0) target = $region25
    $region24: #{cnn_model_forward.1} parent=1 // pred_region
      _
    $region25: #{cnn_model_forward.1} parent=1 // pred_fallthru
      _
    %v25 = vld [vmem:[%s5] sm:$0x1]
    %v26 = vld [vmem:[%s5 + $0x1] sm:$0x1]
    %v27 = vld [vmem:[%s5 + $0x2] sm:$0x1]
    %v28 = vld [vmem:[%s5 + $0x3] sm:$0x1]
    %v29 = vld [vmem:[%s0] sm:$0xff]
    %v30 = vld [vmem:[%s0 + $0x8] sm:$0xff]
    %v31 = vld [vmem:[%s0 + $0x10] sm:$0xff]
    %v32 = vld [vmem:[%s0 + $0x18] sm:$0xff]
    %v33 = vld [vmem:[%s0 + $0x20] sm:$0xff]
    %v34 = vld [vmem:[%s0 + $0x28] sm:$0xff]
    %v35 = vld [vmem:[%s0 + $0x30] sm:$0xff]
    %v36 = vld [vmem:[%s0 + $0x38] sm:$0xff]
    %v37 = vlaneseq
    %v38 = vshrl.u32 %v37, 7
    %v39 = vadd.s32 %v38, 8
    %v40 = vadd.s32 %v38, 16
    %v41 = vadd.s32 %v38, 24
    %v42 = vadd.s32 %v38, 32
    %v43 = vadd.s32 %v38, 40
    %v44 = vadd.s32 %v38, 48
    %v45 = vadd.s32 %v38, 56
    %vm46 = vcmp.lt.s32.totalorder %v38, 0
    %v47 = vsub.s32 0, %v38
    %v48 = vsel %vm46, %v47, %v38
    %v49 = vshrl.u32 %v48, 4
    %v50 = vand.u32 %v48, 15
    %v51 = vsub.s32 0, %v50
    %v52 = vsel %vm46, %v51, %v50
    %vm53 = vcmp.lt.s32.totalorder %v39, 0
    %v54 = vsub.s32 0, %v39
    %v55 = vsel %vm53, %v54, %v39
    %v56 = vshrl.u32 %v55, 4
    %v57 = vand.u32 %v55, 15
    %v58 = vsub.s32 0, %v57
    %v59 = vsel %vm53, %v58, %v57
    %vm60 = vcmp.lt.s32.totalorder %v40, 0
    %v61 = vsub.s32 0, %v40
    %v62 = vsel %vm60, %v61, %v40
    %v63 = vshrl.u32 %v62, 4
    %v64 = vand.u32 %v62, 15
    %v65 = vsub.s32 0, %v64
    %v66 = vsel %vm60, %v65, %v64
    %vm67 = vcmp.lt.s32.totalorder %v41, 0
    %v68 = vsub.s32 0, %v41
    %v69 = vsel %vm67, %v68, %v41
    %v70 = vshrl.u32 %v69, 4
    %v71 = vand.u32 %v69, 15
    %v72 = vsub.s32 0, %v71
    %v73 = vsel %vm67, %v72, %v71
    %vm74 = vcmp.lt.s32.totalorder %v42, 0
    %v75 = vsub.s32 0, %v42
    %v76 = vsel %vm74, %v75, %v42
    %v77 = vshrl.u32 %v76, 4
    %v78 = vand.u32 %v76, 15
    %v79 = vsub.s32 0, %v78
    %v80 = vsel %vm74, %v79, %v78
    %vm81 = vcmp.lt.s32.totalorder %v43, 0
    %v82 = vsub.s32 0, %v43
    %v83 = vsel %vm81, %v82, %v43
    %v84 = vshrl.u32 %v83, 4
    %v85 = vand.u32 %v83, 15
    %v86 = vsub.s32 0, %v85
    %v87 = vsel %vm81, %v86, %v85
    %vm88 = vcmp.lt.s32.totalorder %v44, 0
    %v89 = vsub.s32 0, %v44
    %v90 = vsel %vm88, %v89, %v44
    %v91 = vshrl.u32 %v90, 4
    %v92 = vand.u32 %v90, 15
    %v93 = vsub.s32 0, %v92
    %v94 = vsel %vm88, %v93, %v92
    %vm95 = vcmp.lt.s32.totalorder %v45, 0
    %v96 = vsub.s32 0, %v45
    %v97 = vsel %vm95, %v96, %v45
    %v98 = vshrl.u32 %v97, 4
    %v99 = vand.u32 %v97, 15
    %v100 = vsub.s32 0, %v99
    %v101 = vsel %vm95, %v100, %v99
    %vm102 = vcmp.ne.s32.totalorder %v52, 0
    %vm103 = vcmp.ne.s32.totalorder %v59, 0
    %vm104 = vcmp.ne.s32.totalorder %v66, 0
    %vm105 = vcmp.ne.s32.totalorder %v73, 0
    %vm106 = vcmp.ne.s32.totalorder %v80, 0
    %vm107 = vcmp.ne.s32.totalorder %v87, 0
    %vm108 = vcmp.ne.s32.totalorder %v94, 0
    %vm109 = vcmp.ne.s32.totalorder %v101, 0
    %vm110 = vcmp.lt.s32.totalorder %v52, 0
    %vm111 = vcmp.lt.s32.totalorder %v59, 0
    %vm112 = vcmp.lt.s32.totalorder %v66, 0
    %vm113 = vcmp.lt.s32.totalorder %v73, 0
    %vm114 = vcmp.lt.s32.totalorder %v80, 0
    %vm115 = vcmp.lt.s32.totalorder %v87, 0
    %vm116 = vcmp.lt.s32.totalorder %v94, 0
    %vm117 = vcmp.lt.s32.totalorder %v101, 0
    %vm118 = vmand %vm110, %vm102
    %vm119 = vmand %vm111, %vm103
    %vm120 = vmand %vm112, %vm104
    %vm121 = vmand %vm113, %vm105
    %vm122 = vmand %vm114, %vm106
    %vm123 = vmand %vm115, %vm107
    %vm124 = vmand %vm116, %vm108
    %vm125 = vmand %vm117, %vm109
    %v126 = vadd.s32 %v52, 16
    %v127 = vadd.s32 %v59, 16
    %v128 = vadd.s32 %v66, 16
    %v129 = vadd.s32 %v73, 16
    %v130 = vadd.s32 %v80, 16
    %v131 = vadd.s32 %v87, 16
    %v132 = vadd.s32 %v94, 16
    %v133 = vadd.s32 %v101, 16
    %v134 = vsel %vm118, %v126, %v52
    %v135 = vsel %vm119, %v127, %v59
    %v136 = vsel %vm120, %v128, %v66
    %v137 = vsel %vm121, %v129, %v73
    %v138 = vsel %vm122, %v130, %v80
    %v139 = vsel %vm123, %v131, %v87
    %v140 = vsel %vm124, %v132, %v94
    %v141 = vsel %vm125, %v133, %v101
    %vm142 = vcmp.ge.s32.totalorder %v134, 1
    %vm143 = vcmp.ge.s32.totalorder %v135, 1
    %vm144 = vcmp.ge.s32.totalorder %v136, 1
    %vm145 = vcmp.ge.s32.totalorder %v137, 1
    %vm146 = vcmp.ge.s32.totalorder %v138, 1
    %vm147 = vcmp.ge.s32.totalorder %v139, 1
    %vm148 = vcmp.ge.s32.totalorder %v140, 1
    %vm149 = vcmp.ge.s32.totalorder %v141, 1
    %vm158 = vcmask 1040384
    %v159 = vrot.slane %v29, 7
    %v160 = vrot.slane %v30, 7
    %v161 = vsel %vm158, %v159, %v160
    %v162 = vrot.slane %v31, 7
    %v163 = vsel %vm158, %v160, %v162
    %v164 = vrot.slane %v32, 7
    %v165 = vsel %vm158, %v162, %v164
    %v166 = vrot.slane %v33, 7
    %v167 = vsel %vm158, %v164, %v166
    %v168 = vrot.slane %v34, 7
    %v169 = vsel %vm158, %v166, %v168
    %v170 = vrot.slane %v35, 7
    %v171 = vsel %vm158, %v168, %v170
    %v172 = vrot.slane %v36, 7
    %v173 = vsel %vm158, %v170, %v172
    %174 = vrot.lane.b32.xlu0 %v159, 125
    %v175 = vpop.permute.xlu0 %174
    %176 = vrot.lane.b32.xlu0 %v161, 125
    %v177 = vpop.permute.xlu0 %176
    %178 = vrot.lane.b32.xlu0 %v163, 125
    %v179 = vpop.permute.xlu0 %178
    %180 = vrot.lane.b32.xlu0 %v165, 125
    %v181 = vpop.permute.xlu0 %180
    %182 = vrot.lane.b32.xlu0 %v167, 125
    %v183 = vpop.permute.xlu0 %182
    %184 = vrot.lane.b32.xlu0 %v169, 125
    %v185 = vpop.permute.xlu0 %184
    %186 = vrot.lane.b32.xlu0 %v171, 125
    %v187 = vpop.permute.xlu0 %186
    %188 = vrot.lane.b32.xlu0 %v173, 125
    %v189 = vpop.permute.xlu0 %188
    %v198 = vsel %vm158, 0.0, %v175
    %v199 = vsel %vm142, %v198, 0.0
    %v200 = vsel %vm143, %v177, 0.0
    %v201 = vsel %vm144, %v179, 0.0
    %v202 = vsel %vm145, %v181, 0.0
    %v203 = vsel %vm146, %v183, 0.0
    %v204 = vsel %vm147, %v185, 0.0
    %v205 = vsel %vm148, %v187, 0.0
    %v206 = vsel %vm149, %v189, 0.0
    %vm207 = vcmp.le.s32.totalorder %v134, 14
    %vm208 = vcmp.le.s32.totalorder %v135, 14
    %vm209 = vcmp.le.s32.totalorder %v136, 14
    %vm210 = vcmp.le.s32.totalorder %v137, 14
    %vm211 = vcmp.le.s32.totalorder %v138, 14
    %vm212 = vcmp.le.s32.totalorder %v139, 14
    %vm213 = vcmp.le.s32.totalorder %v140, 14
    %vm214 = vcmp.le.s32.totalorder %v141, 14
    %vm215 = vcmask 1046528
    %v216 = vrot.slane %v29, 1
    %v217 = vrot.slane %v30, 1
    %v218 = vsel %vm215, %v216, %v217
    %v219 = vrot.slane %v31, 1
    %v220 = vsel %vm215, %v217, %v219
    %v221 = vrot.slane %v32, 1
    %v222 = vsel %vm215, %v219, %v221
    %v223 = vrot.slane %v33, 1
    %v224 = vsel %vm215, %v221, %v223
    %v225 = vrot.slane %v34, 1
    %v226 = vsel %vm215, %v223, %v225
    %v227 = vrot.slane %v35, 1
    %v228 = vsel %vm215, %v225, %v227
    %v229 = vrot.slane %v36, 1
    %v230 = vsel %vm215, %v227, %v229
    %v239 = vsel %vm215, %v229, 0.0
    %v240 = vsel %vm207, %v218, 0.0
    %v241 = vsel %vm208, %v220, 0.0
    %v242 = vsel %vm209, %v222, 0.0
    %v243 = vsel %vm210, %v224, 0.0
    %v244 = vsel %vm211, %v226, 0.0
    %v245 = vsel %vm212, %v228, 0.0
    %v246 = vsel %vm213, %v230, 0.0
    %v247 = vsel %vm214, %v239, 0.0
    %v248 = vld [vmem:[%s1] sm:$0x7]
    %250 = vset.pattern.permute.xlu0 0
    %251 = vperm.xlu0 %250, %v199
    %v252 = vpop.permute.xlu0 %251
    %255 = vset.pattern.permute.xlu0 0
    %256 = vperm.xlu0 %255, %v200
    %v257 = vpop.permute.xlu0 %256
    %260 = vset.pattern.permute.xlu0 0
    %261 = vperm.xlu0 %260, %v201
    %v262 = vpop.permute.xlu0 %261
    %265 = vset.pattern.permute.xlu0 0
    %266 = vperm.xlu0 %265, %v202
    %v267 = vpop.permute.xlu0 %266
    %270 = vset.pattern.permute.xlu0 0
    %271 = vperm.xlu0 %270, %v203
    %v272 = vpop.permute.xlu0 %271
    %275 = vset.pattern.permute.xlu0 0
    %276 = vperm.xlu0 %275, %v204
    %v277 = vpop.permute.xlu0 %276
    %280 = vset.pattern.permute.xlu0 0
    %281 = vperm.xlu0 %280, %v205
    %v282 = vpop.permute.xlu0 %281
    %285 = vset.pattern.permute.xlu0 0
    %286 = vperm.xlu0 %285, %v206
    %v287 = vpop.permute.xlu0 %286
    %v289 = vlaneseq
    %v290 = vshrl.u32 %v289, 7
    %v291 = vsub.s32 0, %v290
    %v292 = vrot.slane %v248, %v291
    %v293 = vmul.f32 %v252, %v292
    %v294 = vmul.f32 %v257, %v292
    %v295 = vmul.f32 %v262, %v292
    %v296 = vmul.f32 %v267, %v292
    %v297 = vmul.f32 %v272, %v292
    %v298 = vmul.f32 %v277, %v292
    %v299 = vmul.f32 %v282, %v292
    %v300 = vmul.f32 %v287, %v292
    %301 = vset.pattern.permute.xlu0 0
    %302 = vperm.xlu0 %301, %v29
    %v303 = vpop.permute.xlu0 %302
    %305 = vset.pattern.permute.xlu0 0
    %306 = vperm.xlu0 %305, %v30
    %v307 = vpop.permute.xlu0 %306
    %309 = vset.pattern.permute.xlu0 0
    %310 = vperm.xlu0 %309, %v31
    %v311 = vpop.permute.xlu0 %310
    %313 = vset.pattern.permute.xlu0 0
    %314 = vperm.xlu0 %313, %v32
    %v315 = vpop.permute.xlu0 %314
    %317 = vset.pattern.permute.xlu0 0
    %318 = vperm.xlu0 %317, %v33
    %v319 = vpop.permute.xlu0 %318
    %321 = vset.pattern.permute.xlu0 0
    %322 = vperm.xlu0 %321, %v34
    %v323 = vpop.permute.xlu0 %322
    %325 = vset.pattern.permute.xlu0 0
    %326 = vperm.xlu0 %325, %v35
    %v327 = vpop.permute.xlu0 %326
    %329 = vset.pattern.permute.xlu0 0
    %330 = vperm.xlu0 %329, %v36
    %v331 = vpop.permute.xlu0 %330
    %v333 = vlaneseq
    %v334 = vshrl.u32 %v333, 7
    %v335 = vsub.s32 1, %v334
    %v336 = vrot.slane %v248, %v335
    %v337 = vmul.f32 %v303, %v336
    %v338 = vmul.f32 %v307, %v336
    %v339 = vmul.f32 %v311, %v336
    %v340 = vmul.f32 %v315, %v336
    %v341 = vmul.f32 %v319, %v336
    %v342 = vmul.f32 %v323, %v336
    %v343 = vmul.f32 %v327, %v336
    %v344 = vmul.f32 %v331, %v336
    %v345 = vadd.f32 %v293, %v337
    %v346 = vadd.f32 %v294, %v338
    %v347 = vadd.f32 %v295, %v339
    %v348 = vadd.f32 %v296, %v340
    %v349 = vadd.f32 %v297, %v341
    %v350 = vadd.f32 %v298, %v342
    %v351 = vadd.f32 %v299, %v343
    %v352 = vadd.f32 %v300, %v344
    %353 = vset.pattern.permute.xlu0 1
    %354 = vperm.xlu0 %353, %v29
    %v355 = vpop.permute.xlu0 %354
    %357 = vset.pattern.permute.xlu0 1
    %358 = vperm.xlu0 %357, %v30
    %v359 = vpop.permute.xlu0 %358
    %361 = vset.pattern.permute.xlu0 1
    %362 = vperm.xlu0 %361, %v31
    %v363 = vpop.permute.xlu0 %362
    %365 = vset.pattern.permute.xlu0 1
    %366 = vperm.xlu0 %365, %v32
    %v367 = vpop.permute.xlu0 %366
    %369 = vset.pattern.permute.xlu0 1
    %370 = vperm.xlu0 %369, %v33
    %v371 = vpop.permute.xlu0 %370
    %373 = vset.pattern.permute.xlu0 1
    %374 = vperm.xlu0 %373, %v34
    %v375 = vpop.permute.xlu0 %374
    %377 = vset.pattern.permute.xlu0 1
    %378 = vperm.xlu0 %377, %v35
    %v379 = vpop.permute.xlu0 %378
    %381 = vset.pattern.permute.xlu0 1
    %382 = vperm.xlu0 %381, %v36
    %v383 = vpop.permute.xlu0 %382
    %v385 = vlaneseq
    %v386 = vshrl.u32 %v385, 7
    %v387 = vsub.s32 2, %v386
    %v388 = vrot.slane %v248, %v387
    %v389 = vmul.f32 %v355, %v388
    %v390 = vmul.f32 %v359, %v388
    %v391 = vmul.f32 %v363, %v388
    %v392 = vmul.f32 %v367, %v388
    %v393 = vmul.f32 %v371, %v388
    %v394 = vmul.f32 %v375, %v388
    %v395 = vmul.f32 %v379, %v388
    %v396 = vmul.f32 %v383, %v388
    %v397 = vadd.f32 %v345, %v389
    %v398 = vadd.f32 %v346, %v390
    %v399 = vadd.f32 %v347, %v391
    %v400 = vadd.f32 %v348, %v392
    %v401 = vadd.f32 %v349, %v393
    %v402 = vadd.f32 %v350, %v394
    %v403 = vadd.f32 %v351, %v395
    %v404 = vadd.f32 %v352, %v396
    %v405 = vlaneseq
    %v406 = vshrl.u32 %v405, 7
    %v407 = vsub.s32 0, %v406
    %v408 = vrot.slane %v25, %v407
    %v409 = vadd.f32 %v397, %v408
    %v410 = vadd.f32 %v398, %v408
    %v411 = vadd.f32 %v399, %v408
    %v412 = vadd.f32 %v400, %v408
    %v413 = vadd.f32 %v401, %v408
    %v414 = vadd.f32 %v402, %v408
    %v415 = vadd.f32 %v403, %v408
    %v416 = vadd.f32 %v404, %v408
    %v417 = vmax.f32 %v409, 0.0
    %v418 = vmax.f32 %v410, 0.0
    %v419 = vmax.f32 %v411, 0.0
    %v420 = vmax.f32 %v412, 0.0
    %v421 = vmax.f32 %v413, 0.0
    %v422 = vmax.f32 %v414, 0.0
    %v423 = vmax.f32 %v415, 0.0
    %v424 = vmax.f32 %v416, 0.0
    %v425 = vmul.f32 %v303, %v292
    %v426 = vmul.f32 %v307, %v292
    %v427 = vmul.f32 %v311, %v292
    %v428 = vmul.f32 %v315, %v292
    %v429 = vmul.f32 %v319, %v292
    %v430 = vmul.f32 %v323, %v292
    %v431 = vmul.f32 %v327, %v292
    %v432 = vmul.f32 %v331, %v292
    %v433 = vmul.f32 %v355, %v336
    %v434 = vmul.f32 %v359, %v336
    %v435 = vmul.f32 %v363, %v336
    %v436 = vmul.f32 %v367, %v336
    %v437 = vmul.f32 %v371, %v336
    %v438 = vmul.f32 %v375, %v336
    %v439 = vmul.f32 %v379, %v336
    %v440 = vmul.f32 %v383, %v336
    %v441 = vadd.f32 %v425, %v433
    %v442 = vadd.f32 %v426, %v434
    %v443 = vadd.f32 %v427, %v435
    %v444 = vadd.f32 %v428, %v436
    %v445 = vadd.f32 %v429, %v437
    %v446 = vadd.f32 %v430, %v438
    %v447 = vadd.f32 %v431, %v439
    %v448 = vadd.f32 %v432, %v440
    %449 = vset.pattern.permute.xlu0 2
    %450 = vperm.xlu0 %449, %v29
    %v451 = vpop.permute.xlu0 %450
    %453 = vset.pattern.permute.xlu0 2
    %454 = vperm.xlu0 %453, %v30
    %v455 = vpop.permute.xlu0 %454
    %457 = vset.pattern.permute.xlu0 2
    %458 = vperm.xlu0 %457, %v31
    %v459 = vpop.permute.xlu0 %458
    %461 = vset.pattern.permute.xlu0 2
    %462 = vperm.xlu0 %461, %v32
    %v463 = vpop.permute.xlu0 %462
    %465 = vset.pattern.permute.xlu0 2
    %466 = vperm.xlu0 %465, %v33
    %v467 = vpop.permute.xlu0 %466
    %469 = vset.pattern.permute.xlu0 2
    %470 = vperm.xlu0 %469, %v34
    %v471 = vpop.permute.xlu0 %470
    %473 = vset.pattern.permute.xlu0 2
    %474 = vperm.xlu0 %473, %v35
    %v475 = vpop.permute.xlu0 %474
    %477 = vset.pattern.permute.xlu0 2
    %478 = vperm.xlu0 %477, %v36
    %v479 = vpop.permute.xlu0 %478
    %v481 = vmul.f32 %v451, %v388
    %v482 = vmul.f32 %v455, %v388
    %v483 = vmul.f32 %v459, %v388
    %v484 = vmul.f32 %v463, %v388
    %v485 = vmul.f32 %v467, %v388
    %v486 = vmul.f32 %v471, %v388
    %v487 = vmul.f32 %v475, %v388
    %v488 = vmul.f32 %v479, %v388
    %v489 = vadd.f32 %v441, %v481
    %v490 = vadd.f32 %v442, %v482
    %v491 = vadd.f32 %v443, %v483
    %v492 = vadd.f32 %v444, %v484
    %v493 = vadd.f32 %v445, %v485
    %v494 = vadd.f32 %v446, %v486
    %v495 = vadd.f32 %v447, %v487
    %v496 = vadd.f32 %v448, %v488
    %v497 = vadd.f32 %v489, %v408
    %v498 = vadd.f32 %v490, %v408
    %v499 = vadd.f32 %v491, %v408
    %v500 = vadd.f32 %v492, %v408
    %v501 = vadd.f32 %v493, %v408
    %v502 = vadd.f32 %v494, %v408
    %v503 = vadd.f32 %v495, %v408
    %v504 = vadd.f32 %v496, %v408
    %v505 = vmax.f32 %v497, 0.0
    %v506 = vmax.f32 %v498, 0.0
    %v507 = vmax.f32 %v499, 0.0
    %v508 = vmax.f32 %v500, 0.0
    %v509 = vmax.f32 %v501, 0.0
    %v510 = vmax.f32 %v502, 0.0
    %v511 = vmax.f32 %v503, 0.0
    %v512 = vmax.f32 %v504, 0.0
    %v513 = vmul.f32 %v355, %v292
    %v514 = vmul.f32 %v359, %v292
    %v515 = vmul.f32 %v363, %v292
    %v516 = vmul.f32 %v367, %v292
    %v517 = vmul.f32 %v371, %v292
    %v518 = vmul.f32 %v375, %v292
    %v519 = vmul.f32 %v379, %v292
    %v520 = vmul.f32 %v383, %v292
    %v521 = vmul.f32 %v451, %v336
    %v522 = vmul.f32 %v455, %v336
    %v523 = vmul.f32 %v459, %v336
    %v524 = vmul.f32 %v463, %v336
    %v525 = vmul.f32 %v467, %v336
    %v526 = vmul.f32 %v471, %v336
    %v527 = vmul.f32 %v475, %v336
    %v528 = vmul.f32 %v479, %v336
    %v529 = vadd.f32 %v513, %v521
    %v530 = vadd.f32 %v514, %v522
    %v531 = vadd.f32 %v515, %v523
    %v532 = vadd.f32 %v516, %v524
    %v533 = vadd.f32 %v517, %v525
    %v534 = vadd.f32 %v518, %v526
    %v535 = vadd.f32 %v519, %v527
    %v536 = vadd.f32 %v520, %v528
    %537 = vset.pattern.permute.xlu0 3
    %538 = vperm.xlu0 %537, %v29
    %v539 = vpop.permute.xlu0 %538
    %541 = vset.pattern.permute.xlu0 3
    %542 = vperm.xlu0 %541, %v30
    %v543 = vpop.permute.xlu0 %542
    %545 = vset.pattern.permute.xlu0 3
    %546 = vperm.xlu0 %545, %v31
    %v547 = vpop.permute.xlu0 %546
    %549 = vset.pattern.permute.xlu0 3
    %550 = vperm.xlu0 %549, %v32
    %v551 = vpop.permute.xlu0 %550
    %553 = vset.pattern.permute.xlu0 3
    %554 = vperm.xlu0 %553, %v33
    %v555 = vpop.permute.xlu0 %554
    %557 = vset.pattern.permute.xlu0 3
    %558 = vperm.xlu0 %557, %v34
    %v559 = vpop.permute.xlu0 %558
    %561 = vset.pattern.permute.xlu0 3
    %562 = vperm.xlu0 %561, %v35
    %v563 = vpop.permute.xlu0 %562
    %565 = vset.pattern.permute.xlu0 3
    %566 = vperm.xlu0 %565, %v36
    %v567 = vpop.permute.xlu0 %566
    %v569 = vmul.f32 %v539, %v388
    %v570 = vmul.f32 %v543, %v388
    %v571 = vmul.f32 %v547, %v388
    %v572 = vmul.f32 %v551, %v388
    %v573 = vmul.f32 %v555, %v388
    %v574 = vmul.f32 %v559, %v388
    %v575 = vmul.f32 %v563, %v388
    %v576 = vmul.f32 %v567, %v388
    %v577 = vadd.f32 %v529, %v569
    %v578 = vadd.f32 %v530, %v570
    %v579 = vadd.f32 %v531, %v571
    %v580 = vadd.f32 %v532, %v572
    %v581 = vadd.f32 %v533, %v573
    %v582 = vadd.f32 %v534, %v574
    %v583 = vadd.f32 %v535, %v575
    %v584 = vadd.f32 %v536, %v576
    %v585 = vadd.f32 %v577, %v408
    %v586 = vadd.f32 %v578, %v408
    %v587 = vadd.f32 %v579, %v408
    %v588 = vadd.f32 %v580, %v408
    %v589 = vadd.f32 %v581, %v408
    %v590 = vadd.f32 %v582, %v408
    %v591 = vadd.f32 %v583, %v408
    %v592 = vadd.f32 %v584, %v408
    %v593 = vmax.f32 %v585, 0.0
    %v594 = vmax.f32 %v586, 0.0
    %v595 = vmax.f32 %v587, 0.0
    %v596 = vmax.f32 %v588, 0.0
    %v597 = vmax.f32 %v589, 0.0
    %v598 = vmax.f32 %v590, 0.0
    %v599 = vmax.f32 %v591, 0.0
    %v600 = vmax.f32 %v592, 0.0
    %v601 = vmul.f32 %v451, %v292
    %v602 = vmul.f32 %v455, %v292
    %v603 = vmul.f32 %v459, %v292
    %v604 = vmul.f32 %v463, %v292
    %v605 = vmul.f32 %v467, %v292
    %v606 = vmul.f32 %v471, %v292
    %v607 = vmul.f32 %v475, %v292
    %v608 = vmul.f32 %v479, %v292
    %v609 = vmul.f32 %v539, %v336
    %v610 = vmul.f32 %v543, %v336
    %v611 = vmul.f32 %v547, %v336
    %v612 = vmul.f32 %v551, %v336
    %v613 = vmul.f32 %v555, %v336
    %v614 = vmul.f32 %v559, %v336
    %v615 = vmul.f32 %v563, %v336
    %v616 = vmul.f32 %v567, %v336
    %v617 = vadd.f32 %v601, %v609
    %v618 = vadd.f32 %v602, %v610
    %v619 = vadd.f32 %v603, %v611
    %v620 = vadd.f32 %v604, %v612
    %v621 = vadd.f32 %v605, %v613
    %v622 = vadd.f32 %v606, %v614
    %v623 = vadd.f32 %v607, %v615
    %v624 = vadd.f32 %v608, %v616
    %626 = vset.pattern.permute.xlu0 0
    %627 = vperm.xlu0 %626, %v240
    %v628 = vpop.permute.xlu0 %627
    %631 = vset.pattern.permute.xlu0 0
    %632 = vperm.xlu0 %631, %v241
    %v633 = vpop.permute.xlu0 %632
    %636 = vset.pattern.permute.xlu0 0
    %637 = vperm.xlu0 %636, %v242
    %v638 = vpop.permute.xlu0 %637
    %641 = vset.pattern.permute.xlu0 0
    %642 = vperm.xlu0 %641, %v243
    %v643 = vpop.permute.xlu0 %642
    %646 = vset.pattern.permute.xlu0 0
    %647 = vperm.xlu0 %646, %v244
    %v648 = vpop.permute.xlu0 %647
    %651 = vset.pattern.permute.xlu0 0
    %652 = vperm.xlu0 %651, %v245
    %v653 = vpop.permute.xlu0 %652
    %656 = vset.pattern.permute.xlu0 0
    %657 = vperm.xlu0 %656, %v246
    %v658 = vpop.permute.xlu0 %657
    %661 = vset.pattern.permute.xlu0 0
    %662 = vperm.xlu0 %661, %v247
    %v663 = vpop.permute.xlu0 %662
    %v665 = vmul.f32 %v628, %v388
    %v666 = vmul.f32 %v633, %v388
    %v667 = vmul.f32 %v638, %v388
    %v668 = vmul.f32 %v643, %v388
    %v669 = vmul.f32 %v648, %v388
    %v670 = vmul.f32 %v653, %v388
    %v671 = vmul.f32 %v658, %v388
    %v672 = vmul.f32 %v663, %v388
    %v673 = vadd.f32 %v617, %v665
    %v674 = vadd.f32 %v618, %v666
    %v675 = vadd.f32 %v619, %v667
    %v676 = vadd.f32 %v620, %v668
    %v677 = vadd.f32 %v621, %v669
    %v678 = vadd.f32 %v622, %v670
    %v679 = vadd.f32 %v623, %v671
    %v680 = vadd.f32 %v624, %v672
    %v681 = vadd.f32 %v673, %v408
    %v682 = vadd.f32 %v674, %v408
    %v683 = vadd.f32 %v675, %v408
    %v684 = vadd.f32 %v676, %v408
    %v685 = vadd.f32 %v677, %v408
    %v686 = vadd.f32 %v678, %v408
    %v687 = vadd.f32 %v679, %v408
    %v688 = vadd.f32 %v680, %v408
    %v689 = vmax.f32 %v681, 0.0
    %v690 = vmax.f32 %v682, 0.0
    %v691 = vmax.f32 %v683, 0.0
    %v692 = vmax.f32 %v684, 0.0
    %v693 = vmax.f32 %v685, 0.0
    %v694 = vmax.f32 %v686, 0.0
    %v695 = vmax.f32 %v687, 0.0
    %v696 = vmax.f32 %v688, 0.0
    %v697 = vmax.f32 %v417, %v505
    %v698 = vmax.f32 %v418, %v506
    %v699 = vmax.f32 %v419, %v507
    %v700 = vmax.f32 %v420, %v508
    %v701 = vmax.f32 %v421, %v509
    %v702 = vmax.f32 %v422, %v510
    %v703 = vmax.f32 %v423, %v511
    %v704 = vmax.f32 %v424, %v512
    %v705 = vmax.f32 %v593, %v689
    %v706 = vmax.f32 %v594, %v690
    %v707 = vmax.f32 %v595, %v691
    %v708 = vmax.f32 %v596, %v692
    %v709 = vmax.f32 %v597, %v693
    %v710 = vmax.f32 %v598, %v694
    %v711 = vmax.f32 %v599, %v695
    %v712 = vmax.f32 %v600, %v696
    %v721 = vrot.slane %v705, 7
    %v722 = vrot.slane %v706, 7
    %v723 = vsel %vm158, %v721, %v722
    %v724 = vrot.slane %v707, 7
    %v725 = vsel %vm158, %v722, %v724
    %v726 = vrot.slane %v708, 7
    %v727 = vsel %vm158, %v724, %v726
    %v728 = vrot.slane %v709, 7
    %v729 = vsel %vm158, %v726, %v728
    %v730 = vrot.slane %v710, 7
    %v731 = vsel %vm158, %v728, %v730
    %v732 = vrot.slane %v711, 7
    %v733 = vsel %vm158, %v730, %v732
    %v734 = vrot.slane %v712, 7
    %v735 = vsel %vm158, %v732, %v734
    %v744 = vsel %vm158, 0.0, %v721
    %v745 = vsel %vm142, 1, 0
    %v746 = vsel %vm143, 1, 0
    %v747 = vsel %vm144, 1, 0
    %v748 = vsel %vm145, 1, 0
    %v749 = vsel %vm146, 1, 0
    %v750 = vsel %vm147, 1, 0
    %v751 = vsel %vm148, 1, 0
    %v752 = vsel %vm149, 1, 0
    %vm753 = vcmp.eq.s32.totalorder %v745, 1
    %vm754 = vcmp.eq.s32.totalorder %v746, 1
    %vm755 = vcmp.eq.s32.totalorder %v747, 1
    %vm756 = vcmp.eq.s32.totalorder %v748, 1
    %vm757 = vcmp.eq.s32.totalorder %v749, 1
    %vm758 = vcmp.eq.s32.totalorder %v750, 1
    %vm759 = vcmp.eq.s32.totalorder %v751, 1
    %vm760 = vcmp.eq.s32.totalorder %v752, 1
    %v761 = vsel %vm753, %v744, 0.0
    %v762 = vsel %vm754, %v723, 0.0
    %v763 = vsel %vm755, %v725, 0.0
    %v764 = vsel %vm756, %v727, 0.0
    %v765 = vsel %vm757, %v729, 0.0
    %v766 = vsel %vm758, %v731, 0.0
    %v767 = vsel %vm759, %v733, 0.0
    %v768 = vsel %vm760, %v735, 0.0
    %v777 = vrot.slane %v697, 1
    %v778 = vrot.slane %v698, 1
    %v779 = vsel %vm215, %v777, %v778
    %v780 = vrot.slane %v699, 1
    %v781 = vsel %vm215, %v778, %v780
    %v782 = vrot.slane %v700, 1
    %v783 = vsel %vm215, %v780, %v782
    %v784 = vrot.slane %v701, 1
    %v785 = vsel %vm215, %v782, %v784
    %v786 = vrot.slane %v702, 1
    %v787 = vsel %vm215, %v784, %v786
    %v788 = vrot.slane %v703, 1
    %v789 = vsel %vm215, %v786, %v788
    %v790 = vrot.slane %v704, 1
    %v791 = vsel %vm215, %v788, %v790
    %v800 = vsel %vm215, %v790, 0.0
    %v801 = vsel %vm207, 1, 0
    %v802 = vsel %vm208, 1, 0
    %v803 = vsel %vm209, 1, 0
    %v804 = vsel %vm210, 1, 0
    %v805 = vsel %vm211, 1, 0
    %v806 = vsel %vm212, 1, 0
    %v807 = vsel %vm213, 1, 0
    %v808 = vsel %vm214, 1, 0
    %vm809 = vcmp.eq.s32.totalorder %v801, 1
    %vm810 = vcmp.eq.s32.totalorder %v802, 1
    %vm811 = vcmp.eq.s32.totalorder %v803, 1
    %vm812 = vcmp.eq.s32.totalorder %v804, 1
    %vm813 = vcmp.eq.s32.totalorder %v805, 1
    %vm814 = vcmp.eq.s32.totalorder %v806, 1
    %vm815 = vcmp.eq.s32.totalorder %v807, 1
    %vm816 = vcmp.eq.s32.totalorder %v808, 1
    %v817 = vsel %vm809, %v779, 0.0
    %v818 = vsel %vm810, %v781, 0.0
    %v819 = vsel %vm811, %v783, 0.0
    %v820 = vsel %vm812, %v785, 0.0
    %v821 = vsel %vm813, %v787, 0.0
    %v822 = vsel %vm814, %v789, 0.0
    %v823 = vsel %vm815, %v791, 0.0
    %v824 = vsel %vm816, %v800, 0.0
    %825 = vrot.lane.b32.xlu0 %v697, 16
    %v826 = vpop.permute.xlu0 %825
    %827 = vrot.lane.b32.xlu0 %v698, 16
    %v828 = vpop.permute.xlu0 %827
    %829 = vrot.lane.b32.xlu0 %v699, 16
    %v830 = vpop.permute.xlu0 %829
    %831 = vrot.lane.b32.xlu0 %v700, 16
    %v832 = vpop.permute.xlu0 %831
    %833 = vrot.lane.b32.xlu0 %v701, 16
    %v834 = vpop.permute.xlu0 %833
    %835 = vrot.lane.b32.xlu0 %v702, 16
    %v836 = vpop.permute.xlu0 %835
    %837 = vrot.lane.b32.xlu0 %v703, 16
    %v838 = vpop.permute.xlu0 %837
    %839 = vrot.lane.b32.xlu0 %v704, 16
    %v840 = vpop.permute.xlu0 %839
    %849 = vrot.lane.b32.xlu0 %v705, 32
    %v850 = vpop.permute.xlu0 %849
    %851 = vrot.lane.b32.xlu0 %v706, 32
    %v852 = vpop.permute.xlu0 %851
    %853 = vrot.lane.b32.xlu0 %v707, 32
    %v854 = vpop.permute.xlu0 %853
    %855 = vrot.lane.b32.xlu0 %v708, 32
    %v856 = vpop.permute.xlu0 %855
    %857 = vrot.lane.b32.xlu0 %v709, 32
    %v858 = vpop.permute.xlu0 %857
    %859 = vrot.lane.b32.xlu0 %v710, 32
    %v860 = vpop.permute.xlu0 %859
    %861 = vrot.lane.b32.xlu0 %v711, 32
    %v862 = vpop.permute.xlu0 %861
    %863 = vrot.lane.b32.xlu0 %v712, 32
    %v864 = vpop.permute.xlu0 %863
    %vm873 = vcmask 130048
    %v874 = vsel %vm873, %v761, %v826
    %v875 = vsel %vm873, %v762, %v828
    %v876 = vsel %vm873, %v763, %v830
    %v877 = vsel %vm873, %v764, %v832
    %v878 = vsel %vm873, %v765, %v834
    %v879 = vsel %vm873, %v766, %v836
    %v880 = vsel %vm873, %v767, %v838
    %v881 = vsel %vm873, %v768, %v840
    %vm882 = vcmask 261120
    %v883 = vsel %vm882, %v874, %v850
    %v884 = vsel %vm882, %v875, %v852
    %v885 = vsel %vm882, %v876, %v854
    %v886 = vsel %vm882, %v877, %v856
    %v887 = vsel %vm882, %v878, %v858
    %v888 = vsel %vm882, %v879, %v860
    %v889 = vsel %vm882, %v880, %v862
    %v890 = vsel %vm882, %v881, %v864
    %v891 = vpack.c.bf16 %v884, %v883
    %v892 = vpack.c.bf16 %v886, %v885
    %v893 = vpack.c.bf16 %v888, %v887
    %v894 = vpack.c.bf16 %v890, %v889
    %895 = vrot.lane.b32.xlu0 %v705, 16
    %v896 = vpop.permute.xlu0 %895
    %897 = vrot.lane.b32.xlu0 %v706, 16
    %v898 = vpop.permute.xlu0 %897
    %899 = vrot.lane.b32.xlu0 %v707, 16
    %v900 = vpop.permute.xlu0 %899
    %901 = vrot.lane.b32.xlu0 %v708, 16
    %v902 = vpop.permute.xlu0 %901
    %903 = vrot.lane.b32.xlu0 %v709, 16
    %v904 = vpop.permute.xlu0 %903
    %905 = vrot.lane.b32.xlu0 %v710, 16
    %v906 = vpop.permute.xlu0 %905
    %907 = vrot.lane.b32.xlu0 %v711, 16
    %v908 = vpop.permute.xlu0 %907
    %909 = vrot.lane.b32.xlu0 %v712, 16
    %v910 = vpop.permute.xlu0 %909
    %927 = vrot.lane.b32.xlu0 %v817, 32
    %v928 = vpop.permute.xlu0 %927
    %929 = vrot.lane.b32.xlu0 %v818, 32
    %v930 = vpop.permute.xlu0 %929
    %931 = vrot.lane.b32.xlu0 %v819, 32
    %v932 = vpop.permute.xlu0 %931
    %933 = vrot.lane.b32.xlu0 %v820, 32
    %v934 = vpop.permute.xlu0 %933
    %935 = vrot.lane.b32.xlu0 %v821, 32
    %v936 = vpop.permute.xlu0 %935
    %937 = vrot.lane.b32.xlu0 %v822, 32
    %v938 = vpop.permute.xlu0 %937
    %939 = vrot.lane.b32.xlu0 %v823, 32
    %v940 = vpop.permute.xlu0 %939
    %941 = vrot.lane.b32.xlu0 %v824, 32
    %v942 = vpop.permute.xlu0 %941
    %v951 = vsel %vm873, %v697, %v896
    %v952 = vsel %vm873, %v698, %v898
    %v953 = vsel %vm873, %v699, %v900
    %v954 = vsel %vm873, %v700, %v902
    %v955 = vsel %vm873, %v701, %v904
    %v956 = vsel %vm873, %v702, %v906
    %v957 = vsel %vm873, %v703, %v908
    %v958 = vsel %vm873, %v704, %v910
    %v959 = vsel %vm882, %v951, %v928
    %v960 = vsel %vm882, %v952, %v930
    %v961 = vsel %vm882, %v953, %v932
    %v962 = vsel %vm882, %v954, %v934
    %v963 = vsel %vm882, %v955, %v936
    %v964 = vsel %vm882, %v956, %v938
    %v965 = vsel %vm882, %v957, %v940
    %v966 = vsel %vm882, %v958, %v942
    %v967 = vpack.c.bf16 %v960, %v959
    %v968 = vpack.c.bf16 %v962, %v961
    %v969 = vpack.c.bf16 %v964, %v963
    %v970 = vpack.c.bf16 %v966, %v965
    %v971 = vld [vmem:[%s2] sm:$0xf]
    %v972 = vld [vmem:[%s2 + $0x4] sm:$0xf]
    %v973 = vld [vmem:[%s2 + $0x8] sm:$0xf]
    %v974 = vld [vmem:[%s2 + $0xc] sm:$0xf]
    %v975 = vld [vmem:[%s2 + $0x10] sm:$0xf]
    %v976 = vld [vmem:[%s2 + $0x14] sm:$0xf]
    %v977 = vlaneseq
    %v978 = vshrl.u32 %v977, 7
    %v979 = vsub.s32 0, %v978
    %v980 = vrot.slane %v26, %v979
    %v987 = vunpack.c.l.b16 %v971
    %v988 = vunpack.c.l.b16 %v972
    %v989 = vunpack.c.l.b16 %v973
    %v990 = vunpack.c.l.b16 %v974
    %v991 = vunpack.c.l.b16 %v975
    %v992 = vunpack.c.l.b16 %v976
    %v993 = vpack.c.b16 %v988, %v987
    %v994 = vpack.c.b16 %v990, %v989
    %v995 = vpack.c.b16 %v992, %v991
    %vm999 = vcmask 392192
    %v1001 = vsel %vm999, %v891, 0
    %v1004 = vsel %vm999, %v892, 0
    %v1007 = vsel %vm999, %v893, 0
    %v1010 = vsel %vm999, %v894, 0
    %1012 = vmatprep.subr.bf16.mxu0 0
    %1013 = vmatpush1.bf16.msra.mxu0 %v993
    %1014 = vmatprep.subr.bf16.mxu0 0
    %1015 = vmatpush1.bf16.msra.mxu0 %v994
    %1016 = vmatprep.subr.bf16.mxu0 0
    %1017 = vmatpush1.bf16.msra.mxu0 %v995
    %1018 = vmatprep.subr.bf16.mxu0 0
    %1019 = vmatpush1.bf16.msra.mxu0 0
    %1020 = vmatprep.subr.bf16.mxu0 0
    %1021 = vmatpush1.bf16.msra.mxu0 0
    %1022 = vmatprep.subr.bf16.mxu0 0
    %1023 = vmatpush1.bf16.msra.mxu0 0
    %1024 = vmatprep.subr.bf16.mxu0 0
    %1025 = vmatpush1.bf16.msra.mxu0 0
    %1026 = vmatprep.subr.bf16.mxu0 0
    %1027 = vmatpush1.bf16.msra.mxu0 0
    %1028 = vmatprep.subr.bf16.mxu0 0
    %1029 = vmatpush1.bf16.msra.mxu0 0
    %1030 = vmatprep.subr.bf16.mxu0 0
    %1031 = vmatpush1.bf16.msra.mxu0 0
    %1032 = vmatprep.subr.bf16.mxu0 0
    %1033 = vmatpush1.bf16.msra.mxu0 0
    %1034 = vmatprep.subr.bf16.mxu0 0
    %1035 = vmatpush1.bf16.msra.mxu0 0
    %1036 = vmatprep.subr.bf16.mxu0 0
    %1037 = vmatpush1.bf16.msra.mxu0 0
    %1038 = vmatprep.subr.bf16.mxu0 0
    %1039 = vmatpush1.bf16.msra.mxu0 0
    %1040 = vmatprep.subr.bf16.mxu0 0
    %1041 = vmatpush1.bf16.msra.mxu0 0
    %1042 = vmatprep.subr.bf16.mxu0 0
    %1043 = vmatpush1.bf16.msra.mxu0 0
    %1044 = vmatprep.mubr.bf16.mxu0 0
    %1045 = vmatmul.mubr.bf16.gmra.mrb[0].mxu0 %v1001
    %v1046 = vpop.f32.mrb[0].mxu0
    %v1047 = vadd.f32 %v980, %v1046
    %v1048 = vpop.f32.mrb[0].mxu0
    %v1049 = vpop.f32.mrb[0].mxu0
    %v1050 = vadd.f32 %v980, %v1049
    %v1051 = vpop.f32.mrb[0].mxu0
    %1052 = vmatprep.mubr.bf16.mxu0 0
    %1053 = vmatmul.mubr.bf16.gmra.mrb[0].mxu0 %v1004
    %v1054 = vpop.f32.mrb[0].mxu0
    %v1055 = vadd.f32 %v980, %v1054
    %v1056 = vpop.f32.mrb[0].mxu0
    %v1057 = vpop.f32.mrb[0].mxu0
    %v1058 = vadd.f32 %v980, %v1057
    %v1059 = vpop.f32.mrb[0].mxu0
    %1060 = vmatprep.mubr.bf16.mxu0 0
    %1061 = vmatmul.mubr.bf16.gmra.mrb[0].mxu0 %v1007
    %v1062 = vpop.f32.mrb[0].mxu0
    %v1063 = vadd.f32 %v980, %v1062
    %v1064 = vpop.f32.mrb[0].mxu0
    %v1065 = vpop.f32.mrb[0].mxu0
    %v1066 = vadd.f32 %v980, %v1065
    %v1067 = vpop.f32.mrb[0].mxu0
    %1068 = vmatprep.mubr.bf16.mxu0 0
    %1069 = vmatmul.mubr.bf16.gmra.mrb[0].mxu0 %v1010
    %v1070 = vpop.f32.mrb[0].mxu0
    %v1071 = vadd.f32 %v980, %v1070
    %v1072 = vpop.f32.mrb[0].mxu0
    %v1073 = vpop.f32.mrb[0].mxu0
    %v1074 = vadd.f32 %v980, %v1073
    %v1075 = vpop.f32.mrb[0].mxu0
    %1076 = vdwg.mxu0
    %v1077 = vmax.f32 %v1047, 0.0
    %v1078 = vmax.f32 %v1050, 0.0
    %v1079 = vmax.f32 %v1055, 0.0
    %v1080 = vmax.f32 %v1058, 0.0
    %v1081 = vmax.f32 %v1063, 0.0
    %v1082 = vmax.f32 %v1066, 0.0
    %v1083 = vmax.f32 %v1071, 0.0
    %v1084 = vmax.f32 %v1074, 0.0
    %v1086 = vsel %vm999, %v967, 0
    %v1089 = vsel %vm999, %v968, 0
    %v1092 = vsel %vm999, %v969, 0
    %v1095 = vsel %vm999, %v970, 0
    %1097 = vmatprep.subr.bf16.mxu0 0
    %1098 = vmatpush1.bf16.msra.mxu0 %v993
    %1099 = vmatprep.subr.bf16.mxu0 0
    %1100 = vmatpush1.bf16.msra.mxu0 %v994
    %1101 = vmatprep.subr.bf16.mxu0 0
    %1102 = vmatpush1.bf16.msra.mxu0 %v995
    %1103 = vmatprep.subr.bf16.mxu0 0
    %1104 = vmatpush1.bf16.msra.mxu0 0
    %1105 = vmatprep.subr.bf16.mxu0 0
    %1106 = vmatpush1.bf16.msra.mxu0 0
    %1107 = vmatprep.subr.bf16.mxu0 0
    %1108 = vmatpush1.bf16.msra.mxu0 0
    %1109 = vmatprep.subr.bf16.mxu0 0
    %1110 = vmatpush1.bf16.msra.mxu0 0
    %1111 = vmatprep.subr.bf16.mxu0 0
    %1112 = vmatpush1.bf16.msra.mxu0 0
    %1113 = vmatprep.subr.bf16.mxu0 0
    %1114 = vmatpush1.bf16.msra.mxu0 0
    %1115 = vmatprep.subr.bf16.mxu0 0
    %1116 = vmatpush1.bf16.msra.mxu0 0
    %1117 = vmatprep.subr.bf16.mxu0 0
    %1118 = vmatpush1.bf16.msra.mxu0 0
    %1119 = vmatprep.subr.bf16.mxu0 0
    %1120 = vmatpush1.bf16.msra.mxu0 0
    %1121 = vmatprep.subr.bf16.mxu0 0
    %1122 = vmatpush1.bf16.msra.mxu0 0
    %1123 = vmatprep.subr.bf16.mxu0 0
    %1124 = vmatpush1.bf16.msra.mxu0 0
    %1125 = vmatprep.subr.bf16.mxu0 0
    %1126 = vmatpush1.bf16.msra.mxu0 0
    %1127 = vmatprep.subr.bf16.mxu0 0
    %1128 = vmatpush1.bf16.msra.mxu0 0
    %1129 = vmatprep.mubr.bf16.mxu0 0
    %1130 = vmatmul.mubr.bf16.gmra.mrb[0].mxu0 %v1086
    %v1131 = vpop.f32.mrb[0].mxu0
    %v1132 = vadd.f32 %v980, %v1131
    %v1133 = vpop.f32.mrb[0].mxu0
    %v1134 = vpop.f32.mrb[0].mxu0
    %v1135 = vadd.f32 %v980, %v1134
    %v1136 = vpop.f32.mrb[0].mxu0
    %1137 = vmatprep.mubr.bf16.mxu0 0
    %1138 = vmatmul.mubr.bf16.gmra.mrb[0].mxu0 %v1089
    %v1139 = vpop.f32.mrb[0].mxu0
    %v1140 = vadd.f32 %v980, %v1139
    %v1141 = vpop.f32.mrb[0].mxu0
    %v1142 = vpop.f32.mrb[0].mxu0
    %v1143 = vadd.f32 %v980, %v1142
    %v1144 = vpop.f32.mrb[0].mxu0
    %1145 = vmatprep.mubr.bf16.mxu0 0
    %1146 = vmatmul.mubr.bf16.gmra.mrb[0].mxu0 %v1092
    %v1147 = vpop.f32.mrb[0].mxu0
    %v1148 = vadd.f32 %v980, %v1147
    %v1149 = vpop.f32.mrb[0].mxu0
    %v1150 = vpop.f32.mrb[0].mxu0
    %v1151 = vadd.f32 %v980, %v1150
    %v1152 = vpop.f32.mrb[0].mxu0
    %1153 = vmatprep.mubr.bf16.mxu0 0
    %1154 = vmatmul.mubr.bf16.gmra.mrb[0].mxu0 %v1095
    %v1155 = vpop.f32.mrb[0].mxu0
    %v1156 = vadd.f32 %v980, %v1155
    %v1157 = vpop.f32.mrb[0].mxu0
    %v1158 = vpop.f32.mrb[0].mxu0
    %v1159 = vadd.f32 %v980, %v1158
    %v1160 = vpop.f32.mrb[0].mxu0
    %1161 = vdwg.mxu0
    %v1162 = vmax.f32 %v1132, 0.0
    %v1163 = vmax.f32 %v1135, 0.0
    %v1164 = vmax.f32 %v1140, 0.0
    %v1165 = vmax.f32 %v1143, 0.0
    %v1166 = vmax.f32 %v1148, 0.0
    %v1167 = vmax.f32 %v1151, 0.0
    %v1168 = vmax.f32 %v1156, 0.0
    %v1169 = vmax.f32 %v1159, 0.0
    %v1170 = vmax.f32 %v1077, %v1162
    %v1171 = vmax.f32 %v1078, %v1163
    %v1172 = vmax.f32 %v1079, %v1164
    %v1173 = vmax.f32 %v1080, %v1165
    %v1174 = vmax.f32 %v1081, %v1166
    %v1175 = vmax.f32 %v1082, %v1167
    %v1176 = vmax.f32 %v1083, %v1168
    %v1177 = vmax.f32 %v1084, %v1169
    %v1179 = vrot.slane %v1170, 1
    %1180 = vrot.lane.b32.xlu0 %v1179, 32
    %v1181 = vpop.permute.xlu0 %1180
    %v1183 = vrot.slane %v1170, 2
    %1184 = vrot.lane.b32.xlu0 %v1183, 64
    %v1185 = vpop.permute.xlu0 %1184
    %v1187 = vrot.slane %v1170, 3
    %1188 = vrot.lane.b32.xlu0 %v1187, 96
    %v1189 = vpop.permute.xlu0 %1188
    %v1191 = vrot.slane %v1170, 4
    %v1193 = vrot.slane %v1170, 5
    %1194 = vrot.lane.b32.xlu0 %v1193, 32
    %v1195 = vpop.permute.xlu0 %1194
    %v1197 = vrot.slane %v1170, 6
    %1198 = vrot.lane.b32.xlu0 %v1197, 64
    %v1199 = vpop.permute.xlu0 %1198
    %v1201 = vrot.slane %v1170, 7
    %1202 = vrot.lane.b32.xlu0 %v1201, 96
    %v1203 = vpop.permute.xlu0 %1202
    %v1206 = vrot.slane %v1171, 1
    %1207 = vrot.lane.b32.xlu0 %v1206, 32
    %v1208 = vpop.permute.xlu0 %1207
    %v1210 = vrot.slane %v1171, 2
    %1211 = vrot.lane.b32.xlu0 %v1210, 64
    %v1212 = vpop.permute.xlu0 %1211
    %v1214 = vrot.slane %v1171, 3
    %1215 = vrot.lane.b32.xlu0 %v1214, 96
    %v1216 = vpop.permute.xlu0 %1215
    %v1218 = vrot.slane %v1171, 4
    %v1220 = vrot.slane %v1171, 5
    %1221 = vrot.lane.b32.xlu0 %v1220, 32
    %v1222 = vpop.permute.xlu0 %1221
    %v1224 = vrot.slane %v1171, 6
    %1225 = vrot.lane.b32.xlu0 %v1224, 64
    %v1226 = vpop.permute.xlu0 %1225
    %v1228 = vrot.slane %v1171, 7
    %1229 = vrot.lane.b32.xlu0 %v1228, 96
    %v1230 = vpop.permute.xlu0 %1229
    %v1232 = vsel %vm882, %v1170, %v1181
    %vm1233 = vcmask 523264
    %v1234 = vsel %vm1233, %v1232, %v1185
    %vm1235 = vcmask 785408
    %v1236 = vsel %vm1235, %v1234, %v1189
    %v1237 = vsel %vm882, %v1191, %v1195
    %v1238 = vsel %vm1233, %v1237, %v1199
    %v1239 = vsel %vm1235, %v1238, %v1203
    %v1240 = vsel %vm882, %v1171, %v1208
    %v1241 = vsel %vm1233, %v1240, %v1212
    %v1242 = vsel %vm1235, %v1241, %v1216
    %v1243 = vsel %vm882, %v1218, %v1222
    %v1244 = vsel %vm1233, %v1243, %v1226
    %v1245 = vsel %vm1235, %v1244, %v1230
    %v1247 = vrot.slane %v1172, 1
    %1248 = vrot.lane.b32.xlu0 %v1247, 32
    %v1249 = vpop.permute.xlu0 %1248
    %v1251 = vrot.slane %v1172, 2
    %1252 = vrot.lane.b32.xlu0 %v1251, 64
    %v1253 = vpop.permute.xlu0 %1252
    %v1255 = vrot.slane %v1172, 3
    %1256 = vrot.lane.b32.xlu0 %v1255, 96
    %v1257 = vpop.permute.xlu0 %1256
    %v1259 = vrot.slane %v1172, 4
    %v1261 = vrot.slane %v1172, 5
    %1262 = vrot.lane.b32.xlu0 %v1261, 32
    %v1263 = vpop.permute.xlu0 %1262
    %v1265 = vrot.slane %v1172, 6
    %1266 = vrot.lane.b32.xlu0 %v1265, 64
    %v1267 = vpop.permute.xlu0 %1266
    %v1269 = vrot.slane %v1172, 7
    %1270 = vrot.lane.b32.xlu0 %v1269, 96
    %v1271 = vpop.permute.xlu0 %1270
    %v1274 = vrot.slane %v1173, 1
    %1275 = vrot.lane.b32.xlu0 %v1274, 32
    %v1276 = vpop.permute.xlu0 %1275
    %v1278 = vrot.slane %v1173, 2
    %1279 = vrot.lane.b32.xlu0 %v1278, 64
    %v1280 = vpop.permute.xlu0 %1279
    %v1282 = vrot.slane %v1173, 3
    %1283 = vrot.lane.b32.xlu0 %v1282, 96
    %v1284 = vpop.permute.xlu0 %1283
    %v1286 = vrot.slane %v1173, 4
    %v1288 = vrot.slane %v1173, 5
    %1289 = vrot.lane.b32.xlu0 %v1288, 32
    %v1290 = vpop.permute.xlu0 %1289
    %v1292 = vrot.slane %v1173, 6
    %1293 = vrot.lane.b32.xlu0 %v1292, 64
    %v1294 = vpop.permute.xlu0 %1293
    %v1296 = vrot.slane %v1173, 7
    %1297 = vrot.lane.b32.xlu0 %v1296, 96
    %v1298 = vpop.permute.xlu0 %1297
    %v1300 = vsel %vm882, %v1172, %v1249
    %v1301 = vsel %vm1233, %v1300, %v1253
    %v1302 = vsel %vm1235, %v1301, %v1257
    %v1303 = vsel %vm882, %v1259, %v1263
    %v1304 = vsel %vm1233, %v1303, %v1267
    %v1305 = vsel %vm1235, %v1304, %v1271
    %v1306 = vsel %vm882, %v1173, %v1276
    %v1307 = vsel %vm1233, %v1306, %v1280
    %v1308 = vsel %vm1235, %v1307, %v1284
    %v1309 = vsel %vm882, %v1286, %v1290
    %v1310 = vsel %vm1233, %v1309, %v1294
    %v1311 = vsel %vm1235, %v1310, %v1298
    %v1313 = vrot.slane %v1174, 1
    %1314 = vrot.lane.b32.xlu0 %v1313, 32
    %v1315 = vpop.permute.xlu0 %1314
    %v1317 = vrot.slane %v1174, 2
    %1318 = vrot.lane.b32.xlu0 %v1317, 64
    %v1319 = vpop.permute.xlu0 %1318
    %v1321 = vrot.slane %v1174, 3
    %1322 = vrot.lane.b32.xlu0 %v1321, 96
    %v1323 = vpop.permute.xlu0 %1322
    %v1325 = vrot.slane %v1174, 4
    %v1327 = vrot.slane %v1174, 5
    %1328 = vrot.lane.b32.xlu0 %v1327, 32
    %v1329 = vpop.permute.xlu0 %1328
    %v1331 = vrot.slane %v1174, 6
    %1332 = vrot.lane.b32.xlu0 %v1331, 64
    %v1333 = vpop.permute.xlu0 %1332
    %v1335 = vrot.slane %v1174, 7
    %1336 = vrot.lane.b32.xlu0 %v1335, 96
    %v1337 = vpop.permute.xlu0 %1336
    %v1340 = vrot.slane %v1175, 1
    %1341 = vrot.lane.b32.xlu0 %v1340, 32
    %v1342 = vpop.permute.xlu0 %1341
    %v1344 = vrot.slane %v1175, 2
    %1345 = vrot.lane.b32.xlu0 %v1344, 64
    %v1346 = vpop.permute.xlu0 %1345
    %v1348 = vrot.slane %v1175, 3
    %1349 = vrot.lane.b32.xlu0 %v1348, 96
    %v1350 = vpop.permute.xlu0 %1349
    %v1352 = vrot.slane %v1175, 4
    %v1354 = vrot.slane %v1175, 5
    %1355 = vrot.lane.b32.xlu0 %v1354, 32
    %v1356 = vpop.permute.xlu0 %1355
    %v1358 = vrot.slane %v1175, 6
    %1359 = vrot.lane.b32.xlu0 %v1358, 64
    %v1360 = vpop.permute.xlu0 %1359
    %v1362 = vrot.slane %v1175, 7
    %1363 = vrot.lane.b32.xlu0 %v1362, 96
    %v1364 = vpop.permute.xlu0 %1363
    %v1366 = vsel %vm882, %v1174, %v1315
    %v1367 = vsel %vm1233, %v1366, %v1319
    %v1368 = vsel %vm1235, %v1367, %v1323
    %v1369 = vsel %vm882, %v1325, %v1329
    %v1370 = vsel %vm1233, %v1369, %v1333
    %v1371 = vsel %vm1235, %v1370, %v1337
    %v1372 = vsel %vm882, %v1175, %v1342
    %v1373 = vsel %vm1233, %v1372, %v1346
    %v1374 = vsel %vm1235, %v1373, %v1350
    %v1375 = vsel %vm882, %v1352, %v1356
    %v1376 = vsel %vm1233, %v1375, %v1360
    %v1377 = vsel %vm1235, %v1376, %v1364
    %v1379 = vrot.slane %v1176, 1
    %1380 = vrot.lane.b32.xlu0 %v1379, 32
    %v1381 = vpop.permute.xlu0 %1380
    %v1383 = vrot.slane %v1176, 2
    %1384 = vrot.lane.b32.xlu0 %v1383, 64
    %v1385 = vpop.permute.xlu0 %1384
    %v1387 = vrot.slane %v1176, 3
    %1388 = vrot.lane.b32.xlu0 %v1387, 96
    %v1389 = vpop.permute.xlu0 %1388
    %v1391 = vrot.slane %v1176, 4
    %v1393 = vrot.slane %v1176, 5
    %1394 = vrot.lane.b32.xlu0 %v1393, 32
    %v1395 = vpop.permute.xlu0 %1394
    %v1397 = vrot.slane %v1176, 6
    %1398 = vrot.lane.b32.xlu0 %v1397, 64
    %v1399 = vpop.permute.xlu0 %1398
    %v1401 = vrot.slane %v1176, 7
    %1402 = vrot.lane.b32.xlu0 %v1401, 96
    %v1403 = vpop.permute.xlu0 %1402
    %v1406 = vrot.slane %v1177, 1
    %1407 = vrot.lane.b32.xlu0 %v1406, 32
    %v1408 = vpop.permute.xlu0 %1407
    %v1410 = vrot.slane %v1177, 2
    %1411 = vrot.lane.b32.xlu0 %v1410, 64
    %v1412 = vpop.permute.xlu0 %1411
    %v1414 = vrot.slane %v1177, 3
    %1415 = vrot.lane.b32.xlu0 %v1414, 96
    %v1416 = vpop.permute.xlu0 %1415
    %v1418 = vrot.slane %v1177, 4
    %v1420 = vrot.slane %v1177, 5
    %1421 = vrot.lane.b32.xlu0 %v1420, 32
    %v1422 = vpop.permute.xlu0 %1421
    %v1424 = vrot.slane %v1177, 6
    %1425 = vrot.lane.b32.xlu0 %v1424, 64
    %v1426 = vpop.permute.xlu0 %1425
    %v1428 = vrot.slane %v1177, 7
    %1429 = vrot.lane.b32.xlu0 %v1428, 96
    %v1430 = vpop.permute.xlu0 %1429
    %v1432 = vsel %vm882, %v1176, %v1381
    %v1433 = vsel %vm1233, %v1432, %v1385
    %v1434 = vsel %vm1235, %v1433, %v1389
    %v1435 = vsel %vm882, %v1391, %v1395
    %v1436 = vsel %vm1233, %v1435, %v1399
    %v1437 = vsel %vm1235, %v1436, %v1403
    %v1438 = vsel %vm882, %v1177, %v1408
    %v1439 = vsel %vm1233, %v1438, %v1412
    %v1440 = vsel %vm1235, %v1439, %v1416
    %v1441 = vsel %vm882, %v1418, %v1422
    %v1442 = vsel %vm1233, %v1441, %v1426
    %v1443 = vsel %vm1235, %v1442, %v1430
    %v1448 = vrot.slane %v1302, 7
    %v1449 = vrot.slane %v1305, 7
    %v1450 = vrot.slane %v1308, 7
    %v1451 = vrot.slane %v1311, 7
    %v1460 = vrot.slane %v1368, 6
    %v1461 = vrot.slane %v1371, 6
    %v1462 = vrot.slane %v1374, 6
    %v1463 = vrot.slane %v1377, 6
    %v1472 = vrot.slane %v1434, 5
    %v1473 = vrot.slane %v1437, 5
    %v1474 = vrot.slane %v1440, 5
    %v1475 = vrot.slane %v1443, 5
    %v1480 = vsel %vm158, %v1236, %v1448
    %v1481 = vsel %vm158, %v1239, %v1449
    %v1482 = vsel %vm158, %v1242, %v1450
    %v1483 = vsel %vm158, %v1245, %v1451
    %vm1484 = vcmask 1041408
    %v1485 = vsel %vm1484, %v1480, %v1460
    %v1486 = vsel %vm1484, %v1481, %v1461
    %v1487 = vsel %vm1484, %v1482, %v1462
    %v1488 = vsel %vm1484, %v1483, %v1463
    %vm1489 = vcmask 1042432
    %v1490 = vsel %vm1489, %v1485, %v1472
    %v1491 = vsel %vm1489, %v1486, %v1473
    %v1492 = vsel %vm1489, %v1487, %v1474
    %v1493 = vsel %vm1489, %v1488, %v1475
    %v1494 = vpack.c.bf16 %v1490, %v1490
    %v1495 = vpack.c.bf16 %v1491, %v1491
    %v1496 = vpack.c.bf16 %v1492, %v1492
    %v1497 = vpack.c.bf16 %v1493, %v1493
    %v1498 = vld [vmem:[%s3] sm:$0xf]
    %v1499 = vld [vmem:[%s3 + $0x4] sm:$0xf]
    %v1500 = vld [vmem:[%s3 + $0x8] sm:$0xf]
    %v1501 = vld [vmem:[%s3 + $0xc] sm:$0xf]
    %v1502 = vld [vmem:[%s3 + $0x10] sm:$0xf]
    %v1503 = vld [vmem:[%s3 + $0x14] sm:$0xf]
    %v1504 = vld [vmem:[%s3 + $0x18] sm:$0xf]
    %v1505 = vld [vmem:[%s3 + $0x1c] sm:$0xf]
    %v1506 = vld [vmem:[%s3 + $0x20] sm:$0xf]
    %v1507 = vld [vmem:[%s3 + $0x24] sm:$0xf]
    %v1508 = vld [vmem:[%s3 + $0x28] sm:$0xf]
    %v1509 = vld [vmem:[%s3 + $0x2c] sm:$0xf]
    %v1510 = vld [vmem:[%s3 + $0x30] sm:$0xf]
    %v1511 = vld [vmem:[%s3 + $0x34] sm:$0xf]
    %v1512 = vld [vmem:[%s3 + $0x38] sm:$0xf]
    %v1513 = vld [vmem:[%s3 + $0x3c] sm:$0xf]
    %v1514 = vld [vmem:[%s3 + $0x40] sm:$0xf]
    %v1515 = vld [vmem:[%s3 + $0x44] sm:$0xf]
    %v1516 = vld [vmem:[%s3 + $0x48] sm:$0xf]
    %v1517 = vld [vmem:[%s3 + $0x4c] sm:$0xf]
    %v1518 = vld [vmem:[%s3 + $0x50] sm:$0xf]
    %v1519 = vld [vmem:[%s3 + $0x54] sm:$0xf]
    %v1520 = vld [vmem:[%s3 + $0x58] sm:$0xf]
    %v1521 = vld [vmem:[%s3 + $0x5c] sm:$0xf]
    %v1522 = vld [vmem:[%s3 + $0x60] sm:$0xf]
    %v1523 = vld [vmem:[%s3 + $0x64] sm:$0xf]
    %v1524 = vld [vmem:[%s3 + $0x68] sm:$0xf]
    %v1525 = vld [vmem:[%s3 + $0x6c] sm:$0xf]
    %v1526 = vld [vmem:[%s3 + $0x70] sm:$0xf]
    %v1527 = vld [vmem:[%s3 + $0x74] sm:$0xf]
    %v1528 = vld [vmem:[%s3 + $0x78] sm:$0xf]
    %v1529 = vld [vmem:[%s3 + $0x7c] sm:$0xf]
    %v1530 = vld [vmem:[%s3 + $0x80] sm:$0xf]
    %v1531 = vld [vmem:[%s3 + $0x84] sm:$0xf]
    %v1532 = vld [vmem:[%s3 + $0x88] sm:$0xf]
    %v1533 = vld [vmem:[%s3 + $0x8c] sm:$0xf]
    %v1534 = vld [vmem:[%s3 + $0x90] sm:$0xf]
    %v1535 = vld [vmem:[%s3 + $0x94] sm:$0xf]
    %v1536 = vld [vmem:[%s3 + $0x98] sm:$0xf]
    %v1537 = vld [vmem:[%s3 + $0x9c] sm:$0xf]
    %v1538 = vld [vmem:[%s3 + $0xa0] sm:$0xf]
    %v1539 = vld [vmem:[%s3 + $0xa4] sm:$0xf]
    %v1540 = vld [vmem:[%s3 + $0xa8] sm:$0xf]
    %v1541 = vld [vmem:[%s3 + $0xac] sm:$0xf]
    %v1542 = vld [vmem:[%s3 + $0xb0] sm:$0xf]
    %v1543 = vld [vmem:[%s3 + $0xb4] sm:$0xf]
    %v1544 = vld [vmem:[%s3 + $0xb8] sm:$0xf]
    %v1545 = vld [vmem:[%s3 + $0xbc] sm:$0xf]
    %v1546 = vld [vmem:[%s3 + $0xc0] sm:$0xf]
    %v1547 = vld [vmem:[%s3 + $0xc4] sm:$0xf]
    %v1548 = vld [vmem:[%s3 + $0xc8] sm:$0xf]
    %v1549 = vld [vmem:[%s3 + $0xcc] sm:$0xf]
    %v1550 = vld [vmem:[%s3 + $0xd0] sm:$0xf]
    %v1551 = vld [vmem:[%s3 + $0xd4] sm:$0xf]
    %v1552 = vld [vmem:[%s3 + $0xd8] sm:$0xf]
    %v1553 = vld [vmem:[%s3 + $0xdc] sm:$0xf]
    %v1554 = vld [vmem:[%s3 + $0xe0] sm:$0xf]
    %v1555 = vld [vmem:[%s3 + $0xe4] sm:$0xf]
    %v1556 = vld [vmem:[%s3 + $0xe8] sm:$0xf]
    %v1557 = vld [vmem:[%s3 + $0xec] sm:$0xf]
    %v1558 = vld [vmem:[%s3 + $0xf0] sm:$0xf]
    %v1559 = vld [vmem:[%s3 + $0xf4] sm:$0xf]
    %v1560 = vld [vmem:[%s3 + $0xf8] sm:$0xf]
    %v1561 = vld [vmem:[%s3 + $0xfc] sm:$0xf]
    %v1562 = vlaneseq
    %v1563 = vshrl.u32 %v1562, 7
    %v1564 = vsub.s32 0, %v1563
    %v1565 = vrot.slane %v27, %v1564
    %v1630 = vunpack.c.l.b16 %v1498
    %v1631 = vunpack.c.l.b16 %v1499
    %v1632 = vunpack.c.l.b16 %v1500
    %v1633 = vunpack.c.l.b16 %v1501
    %v1634 = vunpack.c.l.b16 %v1502
    %v1635 = vunpack.c.l.b16 %v1503
    %v1636 = vunpack.c.l.b16 %v1504
    %v1637 = vunpack.c.l.b16 %v1505
    %v1638 = vunpack.c.l.b16 %v1506
    %v1639 = vunpack.c.l.b16 %v1507
    %v1640 = vunpack.c.l.b16 %v1508
    %v1641 = vunpack.c.l.b16 %v1509
    %v1642 = vunpack.c.l.b16 %v1510
    %v1643 = vunpack.c.l.b16 %v1511
    %v1644 = vunpack.c.l.b16 %v1512
    %v1645 = vunpack.c.l.b16 %v1513
    %v1646 = vunpack.c.l.b16 %v1514
    %v1647 = vunpack.c.l.b16 %v1515
    %v1648 = vunpack.c.l.b16 %v1516
    %v1649 = vunpack.c.l.b16 %v1517
    %v1650 = vunpack.c.l.b16 %v1518
    %v1651 = vunpack.c.l.b16 %v1519
    %v1652 = vunpack.c.l.b16 %v1520
    %v1653 = vunpack.c.l.b16 %v1521
    %v1654 = vunpack.c.l.b16 %v1522
    %v1655 = vunpack.c.l.b16 %v1523
    %v1656 = vunpack.c.l.b16 %v1524
    %v1657 = vunpack.c.l.b16 %v1525
    %v1658 = vunpack.c.l.b16 %v1526
    %v1659 = vunpack.c.l.b16 %v1527
    %v1660 = vunpack.c.l.b16 %v1528
    %v1661 = vunpack.c.l.b16 %v1529
    %v1662 = vunpack.c.l.b16 %v1530
    %v1663 = vunpack.c.l.b16 %v1531
    %v1664 = vunpack.c.l.b16 %v1532
    %v1665 = vunpack.c.l.b16 %v1533
    %v1666 = vunpack.c.l.b16 %v1534
    %v1667 = vunpack.c.l.b16 %v1535
    %v1668 = vunpack.c.l.b16 %v1536
    %v1669 = vunpack.c.l.b16 %v1537
    %v1670 = vunpack.c.l.b16 %v1538
    %v1671 = vunpack.c.l.b16 %v1539
    %v1672 = vunpack.c.l.b16 %v1540
    %v1673 = vunpack.c.l.b16 %v1541
    %v1674 = vunpack.c.l.b16 %v1542
    %v1675 = vunpack.c.l.b16 %v1543
    %v1676 = vunpack.c.l.b16 %v1544
    %v1677 = vunpack.c.l.b16 %v1545
    %v1678 = vunpack.c.l.b16 %v1546
    %v1679 = vunpack.c.l.b16 %v1547
    %v1680 = vunpack.c.l.b16 %v1548
    %v1681 = vunpack.c.l.b16 %v1549
    %v1682 = vunpack.c.l.b16 %v1550
    %v1683 = vunpack.c.l.b16 %v1551
    %v1684 = vunpack.c.l.b16 %v1552
    %v1685 = vunpack.c.l.b16 %v1553
    %v1686 = vunpack.c.l.b16 %v1554
    %v1687 = vunpack.c.l.b16 %v1555
    %v1688 = vunpack.c.l.b16 %v1556
    %v1689 = vunpack.c.l.b16 %v1557
    %v1690 = vunpack.c.l.b16 %v1558
    %v1691 = vunpack.c.l.b16 %v1559
    %v1692 = vunpack.c.l.b16 %v1560
    %v1693 = vunpack.c.l.b16 %v1561
    %v1694 = vpack.c.b16 %v1631, %v1630
    %v1695 = vpack.c.b16 %v1633, %v1632
    %v1696 = vpack.c.b16 %v1635, %v1634
    %v1697 = vpack.c.b16 %v1637, %v1636
    %v1698 = vpack.c.b16 %v1639, %v1638
    %v1699 = vpack.c.b16 %v1641, %v1640
    %v1700 = vpack.c.b16 %v1643, %v1642
    %v1701 = vpack.c.b16 %v1645, %v1644
    %v1702 = vpack.c.b16 %v1647, %v1646
    %v1703 = vpack.c.b16 %v1649, %v1648
    %v1704 = vpack.c.b16 %v1651, %v1650
    %v1705 = vpack.c.b16 %v1653, %v1652
    %v1706 = vpack.c.b16 %v1655, %v1654
    %v1707 = vpack.c.b16 %v1657, %v1656
    %v1708 = vpack.c.b16 %v1659, %v1658
    %v1709 = vpack.c.b16 %v1661, %v1660
    %v1710 = vpack.c.b16 %v1663, %v1662
    %v1711 = vpack.c.b16 %v1665, %v1664
    %v1712 = vpack.c.b16 %v1667, %v1666
    %v1713 = vpack.c.b16 %v1669, %v1668
    %v1714 = vpack.c.b16 %v1671, %v1670
    %v1715 = vpack.c.b16 %v1673, %v1672
    %v1716 = vpack.c.b16 %v1675, %v1674
    %v1717 = vpack.c.b16 %v1677, %v1676
    %v1718 = vpack.c.b16 %v1679, %v1678
    %v1719 = vpack.c.b16 %v1681, %v1680
    %v1720 = vpack.c.b16 %v1683, %v1682
    %v1721 = vpack.c.b16 %v1685, %v1684
    %v1722 = vpack.c.b16 %v1687, %v1686
    %v1723 = vpack.c.b16 %v1689, %v1688
    %v1724 = vpack.c.b16 %v1691, %v1690
    %v1725 = vpack.c.b16 %v1693, %v1692
    %1758 = vmatprep.subr.bf16.mxu0 0
    %1759 = vmatpush1.bf16.msra.mxu0 %v1694
    %1760 = vmatprep.subr.bf16.mxu0 0
    %1761 = vmatpush1.bf16.msra.mxu0 %v1695
    %1762 = vmatprep.subr.bf16.mxu0 0
    %1763 = vmatpush1.bf16.msra.mxu0 %v1696
    %1764 = vmatprep.subr.bf16.mxu0 0
    %1765 = vmatpush1.bf16.msra.mxu0 %v1697
    %1766 = vmatprep.subr.bf16.mxu0 0
    %1767 = vmatpush1.bf16.msra.mxu0 %v1698
    %1768 = vmatprep.subr.bf16.mxu0 0
    %1769 = vmatpush1.bf16.msra.mxu0 %v1699
    %1770 = vmatprep.subr.bf16.mxu0 0
    %1771 = vmatpush1.bf16.msra.mxu0 %v1700
    %1772 = vmatprep.subr.bf16.mxu0 0
    %1773 = vmatpush1.bf16.msra.mxu0 %v1701
    %1774 = vmatprep.subr.bf16.mxu0 0
    %1775 = vmatpush1.bf16.msra.mxu0 %v1702
    %1776 = vmatprep.subr.bf16.mxu0 0
    %1777 = vmatpush1.bf16.msra.mxu0 %v1703
    %1778 = vmatprep.subr.bf16.mxu0 0
    %1779 = vmatpush1.bf16.msra.mxu0 %v1704
    %1780 = vmatprep.subr.bf16.mxu0 0
    %1781 = vmatpush1.bf16.msra.mxu0 %v1705
    %1782 = vmatprep.subr.bf16.mxu0 0
    %1783 = vmatpush1.bf16.msra.mxu0 %v1706
    %1784 = vmatprep.subr.bf16.mxu0 0
    %1785 = vmatpush1.bf16.msra.mxu0 %v1707
    %1786 = vmatprep.subr.bf16.mxu0 0
    %1787 = vmatpush1.bf16.msra.mxu0 %v1708
    %1788 = vmatprep.subr.bf16.mxu0 0
    %1789 = vmatpush1.bf16.msra.mxu0 %v1709
    %1790 = vmatprep.mubr.bf16.mxu0 %v1495
    %1791 = vmatmul.mubr.bf16.gmra.mrb[0].mxu0 %v1494
    %v1792 = vpop.f32.mrb[0].mxu0
    %v1793 = vadd.f32 %v1565, %v1792
    %v1794 = vpop.f32.mrb[0].mxu0
    %v1795 = vpop.f32.mrb[0].mxu0
    %v1796 = vpop.f32.mrb[0].mxu0
    %1797 = vdwg.mxu0
    %1798 = vmatprep.subr.bf16.mxu0 0
    %1799 = vmatpush1.bf16.msra.mxu0 %v1710
    %1800 = vmatprep.subr.bf16.mxu0 0
    %1801 = vmatpush1.bf16.msra.mxu0 %v1711
    %1802 = vmatprep.subr.bf16.mxu0 0
    %1803 = vmatpush1.bf16.msra.mxu0 %v1712
    %1804 = vmatprep.subr.bf16.mxu0 0
    %1805 = vmatpush1.bf16.msra.mxu0 %v1713
    %1806 = vmatprep.subr.bf16.mxu0 0
    %1807 = vmatpush1.bf16.msra.mxu0 %v1714
    %1808 = vmatprep.subr.bf16.mxu0 0
    %1809 = vmatpush1.bf16.msra.mxu0 %v1715
    %1810 = vmatprep.subr.bf16.mxu0 0
    %1811 = vmatpush1.bf16.msra.mxu0 %v1716
    %1812 = vmatprep.subr.bf16.mxu0 0
    %1813 = vmatpush1.bf16.msra.mxu0 %v1717
    %1814 = vmatprep.subr.bf16.mxu0 0
    %1815 = vmatpush1.bf16.msra.mxu0 %v1718
    %1816 = vmatprep.subr.bf16.mxu0 0
    %1817 = vmatpush1.bf16.msra.mxu0 %v1719
    %1818 = vmatprep.subr.bf16.mxu0 0
    %1819 = vmatpush1.bf16.msra.mxu0 %v1720
    %1820 = vmatprep.subr.bf16.mxu0 0
    %1821 = vmatpush1.bf16.msra.mxu0 %v1721
    %1822 = vmatprep.subr.bf16.mxu0 0
    %1823 = vmatpush1.bf16.msra.mxu0 %v1722
    %1824 = vmatprep.subr.bf16.mxu0 0
    %1825 = vmatpush1.bf16.msra.mxu0 %v1723
    %1826 = vmatprep.subr.bf16.mxu0 0
    %1827 = vmatpush1.bf16.msra.mxu0 %v1724
    %1828 = vmatprep.subr.bf16.mxu0 0
    %1829 = vmatpush1.bf16.msra.mxu0 %v1725
    %1830 = vmatprep.mubr.bf16.mxu0 %v1497
    %1831 = vmatmul.mubr.bf16.gmra.mrb[0].mxu0 %v1496
    %v1832 = vpop.f32.mrb[0].mxu0
    %v1833 = vadd.f32 %v1793, %v1832
    %v1834 = vpop.f32.mrb[0].mxu0
    %v1835 = vpop.f32.mrb[0].mxu0
    %v1836 = vpop.f32.mrb[0].mxu0
    %1837 = vdwg.mxu0
    %v1838 = vmax.f32 %v1833, 0.0
    %v1839 = vpack.c.bf16 %v1838, %v1838
    %v1840 = vld [vmem:[%s4] sm:$0xf]
    %v1841 = vld [vmem:[%s4 + $0x4] sm:$0xf]
    %v1842 = vld [vmem:[%s4 + $0x8] sm:$0xf]
    %v1843 = vld [vmem:[%s4 + $0xc] sm:$0xf]
    %v1844 = vld [vmem:[%s4 + $0x10] sm:$0xf]
    %v1845 = vld [vmem:[%s4 + $0x14] sm:$0xf]
    %v1846 = vld [vmem:[%s4 + $0x18] sm:$0xf]
    %v1847 = vld [vmem:[%s4 + $0x1c] sm:$0xf]
    %v1848 = vlaneseq
    %v1849 = vshrl.u32 %v1848, 7
    %v1850 = vsub.s32 0, %v1849
    %v1851 = vrot.slane %v28, %v1850
    %v1860 = vunpack.c.l.b16 %v1840
    %v1861 = vunpack.c.l.b16 %v1841
    %v1862 = vunpack.c.l.b16 %v1842
    %v1863 = vunpack.c.l.b16 %v1843
    %v1864 = vunpack.c.l.b16 %v1844
    %v1865 = vunpack.c.l.b16 %v1845
    %v1866 = vunpack.c.l.b16 %v1846
    %v1867 = vunpack.c.l.b16 %v1847
    %v1868 = vpack.c.b16 %v1861, %v1860
    %v1869 = vpack.c.b16 %v1863, %v1862
    %v1870 = vpack.c.b16 %v1865, %v1864
    %v1871 = vpack.c.b16 %v1867, %v1866
    %v1877 = vsel %vm1233, %v1839, 0
    %1879 = vmatprep.subr.bf16.mxu0 0
    %1880 = vmatpush1.bf16.msra.mxu0 %v1868
    %1881 = vmatprep.subr.bf16.mxu0 0
    %1882 = vmatpush1.bf16.msra.mxu0 %v1869
    %1883 = vmatprep.subr.bf16.mxu0 0
    %1884 = vmatpush1.bf16.msra.mxu0 %v1870
    %1885 = vmatprep.subr.bf16.mxu0 0
    %1886 = vmatpush1.bf16.msra.mxu0 %v1871
    %1887 = vmatprep.subr.bf16.mxu0 0
    %1888 = vmatpush1.bf16.msra.mxu0 0
    %1889 = vmatprep.subr.bf16.mxu0 0
    %1890 = vmatpush1.bf16.msra.mxu0 0
    %1891 = vmatprep.subr.bf16.mxu0 0
    %1892 = vmatpush1.bf16.msra.mxu0 0
    %1893 = vmatprep.subr.bf16.mxu0 0
    %1894 = vmatpush1.bf16.msra.mxu0 0
    %1895 = vmatprep.subr.bf16.mxu0 0
    %1896 = vmatpush1.bf16.msra.mxu0 0
    %1897 = vmatprep.subr.bf16.mxu0 0
    %1898 = vmatpush1.bf16.msra.mxu0 0
    %1899 = vmatprep.subr.bf16.mxu0 0
    %1900 = vmatpush1.bf16.msra.mxu0 0
    %1901 = vmatprep.subr.bf16.mxu0 0
    %1902 = vmatpush1.bf16.msra.mxu0 0
    %1903 = vmatprep.subr.bf16.mxu0 0
    %1904 = vmatpush1.bf16.msra.mxu0 0
    %1905 = vmatprep.subr.bf16.mxu0 0
    %1906 = vmatpush1.bf16.msra.mxu0 0
    %1907 = vmatprep.subr.bf16.mxu0 0
    %1908 = vmatpush1.bf16.msra.mxu0 0
    %1909 = vmatprep.subr.bf16.mxu0 0
    %1910 = vmatpush1.bf16.msra.mxu0 0
    %1911 = vmatprep.mubr.bf16.mxu0 0
    %1912 = vmatmul.mubr.bf16.gmra.mrb[0].mxu0 %v1877
    %v1913 = vpop.f32.mrb[0].mxu0
    %v1914 = vadd.f32 %v1851, %v1913
    %v1915 = vpop.f32.mrb[0].mxu0
    %v1916 = vpop.f32.mrb[0].mxu0
    %v1917 = vpop.f32.mrb[0].mxu0
    %1918 = vdwg.mxu0
    %vm1919 = vcmask 35840
    %1920 = vst.msk [vmem:[#allocation2] sm:$0xf] %vm1919, %v1914
    // Predicated region
    $region26: #{cnn_model_forward.1} parent=1 // pred_check
      _
    $region27: #{cnn_model_forward.1} parent=1 // pred_check_branch
      %1922 = sbr.rel (0) target = $region29
    $region28: #{cnn_model_forward.1} parent=1 // pred_region
      %s1924 = ssub.s32 64, 64
      %1925 = vsyncadd [#allocation3], %s1924
      %s1927 = sshll.u32 [#allocation2], 4
      %s1928 = int_to_ptr.vmem [resolvable:$true] %s1927
      %1930 = dma.vmem_to_hbm [thread:$0]  %s1928, 64, %s6, [#allocation3]
    $region29: #{cnn_model_forward.1} parent=1 // pred_fallthru
      _
    // Predicated region
    $region30: #{cnn_model_forward.1} parent=1 // pred_check
      _
    $region31: #{cnn_model_forward.1} parent=1 // pred_check_branch
      %1932 = sbr.rel (0) target = $region33
    $region32: #{cnn_model_forward.1} parent=1 // pred_region
      %1933 = dma.done [#allocation3], 64
    $region33: #{cnn_model_forward.1} parent=1 // pred_fallthru
      _
    %1934 = vsyncpa [#allocation3], 1

</llo_original>
